<compile_context>
chip_gen: v7x
topology: tpu7x:2x2x1
jax: 0.10.0
libtpu: 0.0.40
codegen_flags: <defaults>
</compile_context>

<pallas_src>
import jax
import jax.numpy as jnp
from jax import lax
from jax.experimental import pallas as pl
from jax.experimental.pallas import tpu as pltpu


def _round_up(x, m):
    return ((x + m - 1) // m) * m


def _distortion_tile_kernel(mi_ref, mj_ref, hi_ref, hj_ref, invd2_ref, s1_ref, s2_ref):
    """One (bn, bn) tile: accumulate S1 = sum(dist/(D+I)) and S2 = sum(dist^2/(D+I)^2)."""
    jj = pl.program_id(1)

    @pl.when(jj == 0)
    def _():
        s1_ref[...] = jnp.zeros_like(s1_ref)
        s2_ref[...] = jnp.zeros_like(s2_ref)

    # Gram tile on the MXU; contract the last (lane) dim of both operands so no
    # transpose/relayout of the mapping tile precedes the MXU push.
    gram = lax.dot_general(
        mi_ref[...], mj_ref[...], (((1,), (1,)), ((), ())),
        preferred_element_type=jnp.float32,
        precision=lax.Precision.HIGHEST)                       # (bn, bn) f32

    # Half-norm trick: dist^2/2 = h_i + h_j - <m_i, m_j> (clamped against cancellation).
    # invd2_ref already carries the factor 2 and the squared reciprocal, with an
    # exactly-zero diagonal and zeroed padding rows/cols.
    d2h = jnp.maximum(hi_ref[...] + hj_ref[...] - gram, 0.0)   # (bn,1)+(1,bn) broadcast
    w2 = d2h * invd2_ref[...]                                  # dist^2 / (D+I)^2
    w1 = jnp.sqrt(w2)                                          # dist   / (D+I)   (EUP)

    # Triangular tile coverage weight: diagonal tiles (jj == 0) and — for an even number
    # of row tiles — the antipodal column (visited from both sides) get weight 1;
    # every other tile stands in for itself and its transpose -> weight 2.
    n_row_tiles = pl.num_programs(0)
    last = pl.num_programs(1) - 1
    weight_is_one = jnp.logical_or(
        jj == 0, jnp.logical_and(jj == last, last * 2 == n_row_tiles))
    w_tile = jnp.where(weight_is_one, 1.0, 2.0).astype(jnp.float32)

    s1_ref[...] += w_tile * jnp.sum(w1)
    s2_ref[...] += w_tile * jnp.sum(w2)


def prepare_distortion(D, *, block_n=512):
    """One-time, parameter-only preprocessing (the PyTorch module stores D at __init__).

    D is assumed to be a symmetric pairwise target-distance matrix (zero diagonal,
    strictly positive off-diagonal) — required anyway for the module's loss to be finite,
    and what the triangular tile coverage relies on.
    """
    Df = jnp.asarray(D, jnp.float32)
    N = Df.shape[0]

    eye = jnp.eye(N, dtype=jnp.float32)
    denom = Df + eye
    # 2 / (D+I)^2 off-diagonal, exactly 0 on the diagonal (and on the padding below).
    # The factor 2 folds the "/2" of the half-norm squared-distance expansion.
    invd2s = 2.0 * jnp.square((1.0 - eye) / denom)
    # Constant term of the collapsed loss.
    s4 = jnp.sum(jnp.square(Df / denom))

    # Block size: largest multiple of 128 (<= block_n) whose padding stays within ~12.5%
    # of the minimal 128-aligned size; keeps big tiles for big N without blowing up the
    # N^2 stream for awkward N.
    n_min = _round_up(N, 128)
    max_bn = max(128, min(_round_up(block_n, 128), n_min))
    bn = 128
    for cand in range(128, max_bn + 1, 128):
        if _round_up(N, cand) <= max(n_min, (n_min * 9) // 8):
            bn = cand
    n_pad = _round_up(N, bn)

    invd2s_p = jnp.pad(invd2s, ((0, n_pad - N), (0, n_pad - N)))
    return dict(invd2s=invd2s_p, s4=s4, n=N, bn=bn, n_pad=n_pad)


def distortion_loss(mapping, prep, *, scale_free=True):
    """mapping: (N, E) float; prep: prepare_distortion(D) output (or D itself). Scalar f32."""
    if not isinstance(prep, dict):
        prep = prepare_distortion(prep)

    N, E = mapping.shape
    assert N == prep["n"], (N, prep["n"])
    bn, n_pad = prep["bn"], prep["n_pad"]
    e_pad = _round_up(E, 128)
    n_tiles = n_pad // bn
    n_half = n_tiles // 2 + 1          # triangular coverage via modular column remap

    # Per-call O(N*E) work only: single fused pad + row half-norms (hoisted from kernel).
    m_p = jnp.pad(mapping.astype(jnp.float32), ((0, n_pad - N), (0, e_pad - E)))
    h = 0.5 * jnp.sum(m_p * m_p, axis=-1)
    h_col = h.reshape(n_pad, 1)
    h_row = h.reshape(1, n_pad)

    # Double-buffered working set; keep headroom but never exceed v7x-safe territory.
    per_step_bytes = (2 * bn * e_pad + bn * bn + 2 * bn + 2 * 128) * 4
    vmem_limit = int(min(100 * 2 ** 20, max(32 * 2 ** 20, 4 * per_step_bytes)))

    s1_p, s2_p = pl.pallas_call(
        _distortion_tile_kernel,
        out_shape=(
            jax.ShapeDtypeStruct((n_tiles, 1, 128), jnp.float32),
            jax.ShapeDtypeStruct((n_tiles, 1, 128), jnp.float32),
        ),
        grid_spec=pltpu.PrefetchScalarGridSpec(
            num_scalar_prefetch=0,
            grid=(n_tiles, n_half),
            in_specs=[
                pl.BlockSpec((bn, e_pad), lambda i, jj: (i, 0)),                   # rows i
                pl.BlockSpec((bn, e_pad), lambda i, jj: ((i + jj) % n_tiles, 0)),  # rows j
                pl.BlockSpec((bn, 1), lambda i, jj: (i, 0)),                       # half-norms (col)
                pl.BlockSpec((1, bn), lambda i, jj: (0, (i + jj) % n_tiles)),      # half-norms (row)
                pl.BlockSpec((bn, bn), lambda i, jj: (i, (i + jj) % n_tiles)),     # 2/(D+I)^2 tile
            ],
            out_specs=[
                pl.BlockSpec((1, 1, 128), lambda i, jj: (i, 0, 0)),  # per-row-tile S1
                pl.BlockSpec((1, 1, 128), lambda i, jj: (i, 0, 0)),  # per-row-tile S2
            ],
        ),
        compiler_params=pltpu.CompilerParams(
            dimension_semantics=("parallel", "arbitrary"),
            vmem_limit_bytes=vmem_limit,
        ),
    )(m_p, m_p, h_col, h_row, prep["invd2s"])

    # Per-row-tile partials act as a pairwise summation; finish the reduction here.
    s1 = jnp.sum(s1_p[:, 0, 0])
    s2 = jnp.sum(s2_p[:, 0, 0])

    if scale_free:
        scaling = s1 / s2
    else:
        scaling = jnp.float32(1.0)

    total = scaling * scaling * s2 - 2.0 * scaling * s1 + prep["s4"]
    return total / jnp.float32(N * N - N)


def _reference(mapping, D, *, scale_free=True):
    # Pure-JAX reference mirroring the PyTorch forward exactly (broadcast diff + norm).
    diff = mapping[:, None, :] - mapping[None, :, :]
    d = jnp.sqrt(jnp.sum(diff * diff, axis=-1))
    n = D.shape[0]
    eye = jnp.eye(n, dtype=D.dtype)
    if scale_free:
        a = d / (D + eye)
        scaling = a.sum() / jnp.sum(a * a)
    else:
        scaling = 1.0
    d = (scaling * d - D) ** 2 / (D + eye) ** 2
    return d.sum() / (n * n - n)


if __name__ == "__main__":
    key = jax.random.PRNGKey(0)

    def make_case(k, n, e):
        k_map, k_ref = jax.random.split(k)
        mapping = jax.random.normal(k_map, (n, e), dtype=jnp.float32)
        # Deterministic "parameter" D: a valid target-distance matrix built from reference
        # points (symmetric, zero diagonal, strictly positive off-diagonal).
        ref_pts = jax.random.normal(k_ref, (n, e), dtype=jnp.float32)
        rdiff = ref_pts[:, None, :] - ref_pts[None, :, :]
        D = jnp.sqrt(jnp.sum(rdiff * rdiff, axis=-1))
        return mapping, D

    # (N, E, block_n): single-tile case plus small multi-tile cases that exercise the
    # even (antipodal column) and odd triangular-coverage paths.
    cases = [(8, 32, 512), (200, 16, 128), (300, 48, 128)]
    keys = jax.random.split(key, len(cases))
    for (n, e, bnq), k in zip(cases, keys):
        mapping, D = make_case(k, n, e)
        prep = prepare_distortion(D, block_n=bnq)
        for sf in (True, False):
            loss = jax.block_until_ready(distortion_loss(mapping, prep, scale_free=sf))
            ref = _reference(mapping, D, scale_free=sf)
            # Gram-trick distances + collapsed-sum formulation vs the broadcast-diff
            # reference differ at the f32 rounding level.
            assert jnp.allclose(loss, ref, rtol=3e-4, atol=1e-5), (n, e, sf, loss, ref)

    print("KERNEL_OK")
</pallas_src>

<mosaic_0001>
module attributes {stable_mosaic.version = 11 : i64} {
  func.func @_distortion_tile_kernel(%arg0: i32, %arg1: i32, %arg2: memref<128x128xf32, #tpu.memory_space<vmem>>, %arg3: memref<128x128xf32, #tpu.memory_space<vmem>>, %arg4: memref<128x1xf32, #tpu.memory_space<vmem>>, %arg5: memref<1x128xf32, #tpu.memory_space<vmem>>, %arg6: memref<128x128xf32, #tpu.memory_space<vmem>>, %arg7: memref<1x1x128xf32, #tpu.memory_space<vmem>>, %arg8: memref<1x1x128xf32, #tpu.memory_space<vmem>>) attributes {dimension_semantics = [#tpu.dimension_semantics<parallel>, #tpu.dimension_semantics<arbitrary>], iteration_bounds = array<i64: 1, 1>, scalar_prefetch = 0 : i64, scratch_operands = 0 : i64, tpu.core_type = #tpu.core_type<tc>, window_params = [{transform_indices = @transform_0, window_bounds = array<i64: 128, 128>}, {transform_indices = @transform_1, window_bounds = array<i64: 128, 128>}, {transform_indices = @transform_2, window_bounds = array<i64: 128, 1>}, {transform_indices = @transform_3, window_bounds = array<i64: 1, 128>}, {transform_indices = @transform_4, window_bounds = array<i64: 128, 128>}, {transform_indices = @transform_5, window_bounds = array<i64: 1, 1, 128>}, {transform_indices = @transform_6, window_bounds = array<i64: 1, 1, 128>}]} {
    %c0_i32 = arith.constant 0 : i32
    %0 = arith.cmpi eq, %arg1, %c0_i32 : i32
    %1 = arith.extui %0 : i1 to i32
    %c0_i32_0 = arith.constant 0 : i32
    %2 = arith.cmpi ne, %1, %c0_i32_0 : i32
    scf.if %2 {
      %cst_29 = arith.constant 0.000000e+00 : f32
      %40 = vector.broadcast %cst_29 : f32 to vector<1x1x128xf32>
      %c0_30 = arith.constant 0 : index
      %c0_31 = arith.constant 0 : index
      %c0_32 = arith.constant 0 : index
      %41 = vector.load %arg7[%c0_30, %c0_31, %c0_32] : memref<1x1x128xf32, #tpu.memory_space<vmem>>, vector<1x1x128xf32>
      tpu.vector_store %arg7[%c0_30, %c0_31, %c0_32], %40 {strides = array<i32>} : memref<1x1x128xf32, #tpu.memory_space<vmem>>, vector<1x1x128xf32>,
      %cst_33 = arith.constant 0.000000e+00 : f32
      %42 = vector.broadcast %cst_33 : f32 to vector<1x1x128xf32>
      %c0_34 = arith.constant 0 : index
      %c0_35 = arith.constant 0 : index
      %c0_36 = arith.constant 0 : index
      %43 = vector.load %arg8[%c0_34, %c0_35, %c0_36] : memref<1x1x128xf32, #tpu.memory_space<vmem>>, vector<1x1x128xf32>
      tpu.vector_store %arg8[%c0_34, %c0_35, %c0_36], %42 {strides = array<i32>} : memref<1x1x128xf32, #tpu.memory_space<vmem>>, vector<1x1x128xf32>,
    } else {
    }
    %c0 = arith.constant 0 : index
    %c0_1 = arith.constant 0 : index
    %3 = vector.load %arg2[%c0, %c0_1] : memref<128x128xf32, #tpu.memory_space<vmem>>, vector<128x128xf32>
    %c0_2 = arith.constant 0 : index
    %c0_3 = arith.constant 0 : index
    %4 = vector.load %arg3[%c0_2, %c0_3] : memref<128x128xf32, #tpu.memory_space<vmem>>, vector<128x128xf32>
    %cst = arith.constant dense<0.000000e+00> : vector<128x128xf32>
    %5 = tpu.matmul %3, %4, %cst {dimension_numbers = #tpu.dot_dimension_numbers<[1], [1], [0], [0], [0, 0, 1, 0], [], []>, precision = #tpu.contract_precision<fp32>} : vector<128x128xf32>, vector<128x128xf32>, vector<128x128xf32> -> vector<128x128xf32>
    %c0_4 = arith.constant 0 : index
    %c0_5 = arith.constant 0 : index
    %6 = vector.load %arg4[%c0_4, %c0_5] : memref<128x1xf32, #tpu.memory_space<vmem>>, vector<128x1xf32>
    %c0_6 = arith.constant 0 : index
    %c0_7 = arith.constant 0 : index
    %7 = vector.load %arg5[%c0_6, %c0_7] : memref<1x128xf32, #tpu.memory_space<vmem>>, vector<1x128xf32>
    %8 = vector.broadcast %6 : vector<128x1xf32> to vector<128x128xf32>
    %9 = vector.broadcast %7 : vector<1x128xf32> to vector<128x128xf32>
    %10 = arith.addf %8, %9 : vector<128x128xf32>
    %11 = arith.subf %10, %5 : vector<128x128xf32>
    %cst_8 = arith.constant 0.000000e+00 : f32
    %12 = vector.broadcast %cst_8 : f32 to vector<128x128xf32>
    %13 = arith.maximumf %11, %12 : vector<128x128xf32>
    %c0_9 = arith.constant 0 : index
    %c0_10 = arith.constant 0 : index
    %14 = vector.load %arg6[%c0_9, %c0_10] : memref<128x128xf32, #tpu.memory_space<vmem>>, vector<128x128xf32>
    %15 = arith.mulf %13, %14 : vector<128x128xf32>
    %16 = math.sqrt %15 : vector<128x128xf32>
    %c0_i32_11 = arith.constant 0 : i32
    %17 = arith.cmpi eq, %arg1, %c0_i32_11 : i32
    %c0_i32_12 = arith.constant 0 : i32
    %18 = arith.cmpi eq, %arg1, %c0_i32_12 : i32
    %false = arith.constant false
    %19 = arith.andi %18, %false : i1
    %20 = arith.ori %17, %19 : i1
    %cst_13 = arith.constant 1.000000e+00 : f32
    %cst_14 = arith.constant 2.000000e+00 : f32
    %21 = arith.select %20, %cst_13, %cst_14 : f32
    %c0_15 = arith.constant 0 : index
    %c0_16 = arith.constant 0 : index
    %c0_17 = arith.constant 0 : index
    %22 = vector.load %arg7[%c0_15, %c0_16, %c0_17] : memref<1x1x128xf32, #tpu.memory_space<vmem>>, vector<1x1x128xf32>
    %23 = vector.shape_cast %16 : vector<128x128xf32> to vector<1x128x128xf32>
    %cst_18 = arith.constant dense<0.000000e+00> : vector<1xf32>
    %24 = vector.multi_reduction <add>, %23, %cst_18 [1, 2] : vector<1x128x128xf32> to vector<1xf32>
    %25 = vector.shape_cast %24 : vector<1xf32> to vector<1x1x1xf32>
    %26 = vector.extract %25[0, 0, 0] : f32 from vector<1x1x1xf32>
    %27 = arith.mulf %21, %26 : f32
    %28 = vector.broadcast %27 : f32 to vector<1x1x128xf32>
    %29 = arith.addf %22, %28 : vector<1x1x128xf32>
    %c0_19 = arith.constant 0 : index
    %c0_20 = arith.constant 0 : index
    %c0_21 = arith.constant 0 : index
    %30 = vector.load %arg7[%c0_19, %c0_20, %c0_21] : memref<1x1x128xf32, #tpu.memory_space<vmem>>, vector<1x1x128xf32>
    tpu.vector_store %arg7[%c0_19, %c0_20, %c0_21], %29 {strides = array<i32>} : memref<1x1x128xf32, #tpu.memory_space<vmem>>, vector<1x1x128xf32>,
    %c0_22 = arith.constant 0 : index
    %c0_23 = arith.constant 0 : index
    %c0_24 = arith.constant 0 : index
    %31 = vector.load %arg8[%c0_22, %c0_23, %c0_24] : memref<1x1x128xf32, #tpu.memory_space<vmem>>, vector<1x1x128xf32>
    %32 = vector.shape_cast %15 : vector<128x128xf32> to vector<1x128x128xf32>
    %cst_25 = arith.constant dense<0.000000e+00> : vector<1xf32>
    %33 = vector.multi_reduction <add>, %32, %cst_25 [1, 2] : vector<1x128x128xf32> to vector<1xf32>
    %34 = vector.shape_cast %33 : vector<1xf32> to vector<1x1x1xf32>
    %35 = vector.extract %34[0, 0, 0] : f32 from vector<1x1x1xf32>
    %36 = arith.mulf %21, %35 : f32
    %37 = vector.broadcast %36 : f32 to vector<1x1x128xf32>
    %38 = arith.addf %31, %37 : vector<1x1x128xf32>
    %c0_26 = arith.constant 0 : index
    %c0_27 = arith.constant 0 : index
    %c0_28 = arith.constant 0 : index
    %39 = vector.load %arg8[%c0_26, %c0_27, %c0_28] : memref<1x1x128xf32, #tpu.memory_space<vmem>>, vector<1x1x128xf32>
    tpu.vector_store %arg8[%c0_26, %c0_27, %c0_28], %38 {strides = array<i32>} : memref<1x1x128xf32, #tpu.memory_space<vmem>>, vector<1x1x128xf32>,
    return
  }
  func.func @transform_0(%arg0: i32, %arg1: i32) -> (i32, i32) {
    %c0_i32 = arith.constant 0 : i32
    %c0_i32_0 = arith.constant 0 : i32
    return %arg0, %c0_i32 : i32, i32
  }
  func.func @transform_1(%arg0: i32, %arg1: i32) -> (i32, i32) {
    %0 = arith.addi %arg0, %arg1 : i32
    %c1_i32 = arith.constant 1 : i32
    %c0_i32 = arith.constant 0 : i32
    %1 = arith.cmpi eq, %c1_i32, %c0_i32 : i32
    %c1_i32_0 = arith.constant 1 : i32
    %2 = arith.select %1, %c1_i32_0, %c1_i32 : i32
    %3 = arith.remsi %0, %2 : i32
    %c0_i32_1 = arith.constant 0 : i32
    %4 = arith.cmpi ne, %3, %c0_i32_1 : i32
    %c0_i32_2 = arith.constant 0 : i32
    %5 = arith.cmpi slt, %3, %c0_i32_2 : i32
    %c0_i32_3 = arith.constant 0 : i32
    %6 = arith.cmpi slt, %2, %c0_i32_3 : i32
    %7 = arith.xori %5, %6 : i1
    %8 = arith.andi %7, %4 : i1
    %9 = arith.addi %3, %2 : i32
    %10 = arith.select %8, %9, %3 : i32
    %c0_i32_4 = arith.constant 0 : i32
    %c0_i32_5 = arith.constant 0 : i32
    return %10, %c0_i32_4 : i32, i32
  }
  func.func @transform_2(%arg0: i32, %arg1: i32) -> (i32, i32) {
    %c0_i32 = arith.constant 0 : i32
    %c0_i32_0 = arith.constant 0 : i32
    return %arg0, %c0_i32 : i32, i32
  }
  func.func @transform_3(%arg0: i32, %arg1: i32) -> (i32, i32) {
    %0 = arith.addi %arg0, %arg1 : i32
    %c1_i32 = arith.constant 1 : i32
    %c0_i32 = arith.constant 0 : i32
    %1 = arith.cmpi eq, %c1_i32, %c0_i32 : i32
    %c1_i32_0 = arith.constant 1 : i32
    %2 = arith.select %1, %c1_i32_0, %c1_i32 : i32
    %3 = arith.remsi %0, %2 : i32
    %c0_i32_1 = arith.constant 0 : i32
    %4 = arith.cmpi ne, %3, %c0_i32_1 : i32
    %c0_i32_2 = arith.constant 0 : i32
    %5 = arith.cmpi slt, %3, %c0_i32_2 : i32
    %c0_i32_3 = arith.constant 0 : i32
    %6 = arith.cmpi slt, %2, %c0_i32_3 : i32
    %7 = arith.xori %5, %6 : i1
    %8 = arith.andi %7, %4 : i1
    %9 = arith.addi %3, %2 : i32
    %10 = arith.select %8, %9, %3 : i32
    %c0_i32_4 = arith.constant 0 : i32
    %c0_i32_5 = arith.constant 0 : i32
    return %c0_i32_4, %10 : i32, i32
  }
  func.func @transform_4(%arg0: i32, %arg1: i32) -> (i32, i32) {
    %0 = arith.addi %arg0, %arg1 : i32
    %c1_i32 = arith.constant 1 : i32
    %c0_i32 = arith.constant 0 : i32
    %1 = arith.cmpi eq, %c1_i32, %c0_i32 : i32
    %c1_i32_0 = arith.constant 1 : i32
    %2 = arith.select %1, %c1_i32_0, %c1_i32 : i32
    %3 = arith.remsi %0, %2 : i32
    %c0_i32_1 = arith.constant 0 : i32
    %4 = arith.cmpi ne, %3, %c0_i32_1 : i32
    %c0_i32_2 = arith.constant 0 : i32
    %5 = arith.cmpi slt, %3, %c0_i32_2 : i32
    %c0_i32_3 = arith.constant 0 : i32
    %6 = arith.cmpi slt, %2, %c0_i32_3 : i32
    %7 = arith.xori %5, %6 : i1
    %8 = arith.andi %7, %4 : i1
    %9 = arith.addi %3, %2 : i32
    %10 = arith.select %8, %9, %3 : i32
    %c0_i32_4 = arith.constant 0 : i32
    return %arg0, %10 : i32, i32
  }
  func.func @transform_5(%arg0: i32, %arg1: i32) -> (i32, i32, i32) {
    %c0_i32 = arith.constant 0 : i32
    %c0_i32_0 = arith.constant 0 : i32
    %c0_i32_1 = arith.constant 0 : i32
    return %arg0, %c0_i32, %c0_i32_0 : i32, i32, i32
  }
  func.func @transform_6(%arg0: i32, %arg1: i32) -> (i32, i32, i32) {
    %c0_i32 = arith.constant 0 : i32
    %c0_i32_0 = arith.constant 0 : i32
    %c0_i32_1 = arith.constant 0 : i32
    return %arg0, %c0_i32, %c0_i32_0 : i32, i32, i32
  }
}

</mosaic_0001>

<llo_original>
// kernel: tpu_custom_call.1
$region0: #{tpu_custom_call.1}
  #allocation0 [shape = 'u32[]', space=smem, size = 0x4, offset = 0x4, fixed_abs, tag = 'smem constant byte address 0x4 - core index']
  #allocation1 [shape = 'u32[144,128]{1,0:T(1,128)}', space=vmem, size = 0x12000, scoped, tag = 'internal scratch']
  %s0 = inlined_call_operand.vmem [shape: f32[128,128], index: 0, kind: input, shape index: {}]
  %s1 = inlined_call_operand.hbm [shape: f32[128,128], index: 1, kind: input, shape index: {}]
  %s2 = inlined_call_operand.vmem [shape: f32[128,1], index: 2, kind: input, shape index: {}]
  %s3 = inlined_call_operand.vmem [shape: f32[1,128], index: 3, kind: input, shape index: {}]
  %s4 = inlined_call_operand.hbm [shape: f32[128,128], index: 4, kind: input, shape index: {}]
  %s5 = inlined_call_operand.hbm [shape: f32[1,1,128], index: 5, kind: output, shape index: {0}]
  %s6 = inlined_call_operand.hbm [shape: f32[1,1,128], index: 6, kind: output, shape index: {1}]
  %7 = xla_tuple %s5, %s6
  %s8 = sld [smem:[#allocation0]]
  $region50: #{tpu_custom_call.1} parent=0
    _
  %s10 = ssub.s32 1, %s8
  %s11 = scalar_select 0, %s10, %s8
  $region1: #{tpu_custom_call.1} parent=0
    #allocation2 [shape = 'u8[65536]{0}', space=vmem, size = 0x10000, scoped, tag = 'input window, operand 1, single buffered']
    #allocation3 [shape = 's32[1]{0}', space=sflag, size = 0x4, scoped, tag = 'scoped memory for tpu_custom_call.1']
    #allocation4 [shape = 's32[1]{0}', space=sflag, size = 0x4, scoped, tag = 'scoped memory for tpu_custom_call.1']
    #allocation5 [shape = 'u8[65536]{0}', space=vmem, size = 0x10000, scoped, tag = 'input window, operand 4, single buffered']
    #allocation6 [shape = 's32[1]{0}', space=sflag, size = 0x4, scoped, tag = 'scoped memory for tpu_custom_call.1']
    #allocation7 [shape = 'u8[512]{0}', space=vmem, size = 0x400, scoped, tag = 'output window, operand 0, single buffered']
    #allocation8 [shape = 'u8[512]{0}', space=vmem, size = 0x400, scoped, tag = 'output window, operand 1, single buffered']
    #allocation9 [shape = 's32[1]{0}', space=sflag, size = 0x4, scoped, tag = 'scoped memory for tpu_custom_call.1']
    %12 = vsyncpa [#allocation3], 0
    %13 = vsyncpa [#allocation6], 0
    %14 = vsyncpa [#allocation4], 0
    %15 = vsyncpa [#allocation9], 0
    // Predicated region
    $region2: #{tpu_custom_call.1} parent=1 // pred_check
      _
    $region3: #{tpu_custom_call.1} parent=1 // pred_check_branch
      %17 = sbr.rel (0) target = $region5
    $region4: #{tpu_custom_call.1} parent=1 // pred_region
      _
    $region5: #{tpu_custom_call.1} parent=1 // pred_fallthru
      _
    // Predicated region
    $region6: #{tpu_custom_call.1} parent=1 // pred_check
      _
    $region7: #{tpu_custom_call.1} parent=1 // pred_check_branch
      %19 = sbr.rel (0) target = $region9
    $region8: #{tpu_custom_call.1} parent=1 // pred_region
      %s21 = ssub.s32 2048, 2048
      %22 = vsyncadd [#allocation3], %s21
      %s23 = sshll.u32 [#allocation2], 4
      %s24 = int_to_ptr.vmem [resolvable:$true] %s23
      %29 = dma.hbm_to_vmem [thread:$0]  %s1, 2048, %s24, [#allocation3], 128, 128, 8
    $region9: #{tpu_custom_call.1} parent=1 // pred_fallthru
      _
    // Predicated region
    $region10: #{tpu_custom_call.1} parent=1 // pred_check
      _
    $region11: #{tpu_custom_call.1} parent=1 // pred_check_branch
      %31 = sbr.rel (0) target = $region13
    $region12: #{tpu_custom_call.1} parent=1 // pred_region
      _
    $region13: #{tpu_custom_call.1} parent=1 // pred_fallthru
      _
    // Predicated region
    $region14: #{tpu_custom_call.1} parent=1 // pred_check
      _
    $region15: #{tpu_custom_call.1} parent=1 // pred_check_branch
      %33 = sbr.rel (0) target = $region17
    $region16: #{tpu_custom_call.1} parent=1 // pred_region
      _
    $region17: #{tpu_custom_call.1} parent=1 // pred_fallthru
      _
    // Predicated region
    $region18: #{tpu_custom_call.1} parent=1 // pred_check
      _
    $region19: #{tpu_custom_call.1} parent=1 // pred_check_branch
      %35 = sbr.rel (0) target = $region21
    $region20: #{tpu_custom_call.1} parent=1 // pred_region
      %s37 = ssub.s32 2048, 2048
      %38 = vsyncadd [#allocation6], %s37
      %s39 = sshll.u32 [#allocation5], 4
      %s40 = int_to_ptr.vmem [resolvable:$true] %s39
      %45 = dma.hbm_to_vmem [thread:$0]  %s4, 2048, %s40, [#allocation6], 128, 128, 8
    $region21: #{tpu_custom_call.1} parent=1 // pred_fallthru
      _
    // Predicated region
    $region22: #{tpu_custom_call.1} parent=1 // pred_check
      _
    $region23: #{tpu_custom_call.1} parent=1 // pred_check_branch
      %47 = sbr.rel (0) target = $region25
    $region24: #{tpu_custom_call.1} parent=1 // pred_region
      %48 = dma.done [#allocation3], 2048
    $region25: #{tpu_custom_call.1} parent=1 // pred_fallthru
      _
    // Predicated region
    $region26: #{tpu_custom_call.1} parent=1 // pred_check
      _
    $region27: #{tpu_custom_call.1} parent=1 // pred_check_branch
      %50 = sbr.rel (0) target = $region29
    $region28: #{tpu_custom_call.1} parent=1 // pred_region
      %51 = dma.done [#allocation6], 2048
    $region29: #{tpu_custom_call.1} parent=1 // pred_fallthru
      _
    %p52 = scmp.eq.s32.totalorder 0, 0
    // Predicated region
    $region30: #{tpu_custom_call.1} parent=1 // pred_check
      %p53 = pneg %p52
    $region31: #{tpu_custom_call.1} parent=1 // pred_check_branch
      %55 = sbr.rel (%p53) target = $region33
    $region32: #{tpu_custom_call.1} parent=1 // pred_region
      %56 = vst [vmem:[#allocation7] sm:$0x1] 0.0
      %57 = vst [vmem:[#allocation8] sm:$0x1] 0.0
    $region33: #{tpu_custom_call.1} parent=1 // pred_fallthru
      _
    %v58 = vld [vmem:[%s0] sm:$0xff]
    %v59 = vld [vmem:[%s0 + $0x8] sm:$0xff]
    %v60 = vld [vmem:[%s0 + $0x10] sm:$0xff]
    %v61 = vld [vmem:[%s0 + $0x18] sm:$0xff]
    %v62 = vld [vmem:[%s0 + $0x20] sm:$0xff]
    %v63 = vld [vmem:[%s0 + $0x28] sm:$0xff]
    %v64 = vld [vmem:[%s0 + $0x30] sm:$0xff]
    %v65 = vld [vmem:[%s0 + $0x38] sm:$0xff]
    %v66 = vld [vmem:[%s0 + $0x40] sm:$0xff]
    %v67 = vld [vmem:[%s0 + $0x48] sm:$0xff]
    %v68 = vld [vmem:[%s0 + $0x50] sm:$0xff]
    %v69 = vld [vmem:[%s0 + $0x58] sm:$0xff]
    %v70 = vld [vmem:[%s0 + $0x60] sm:$0xff]
    %v71 = vld [vmem:[%s0 + $0x68] sm:$0xff]
    %v72 = vld [vmem:[%s0 + $0x70] sm:$0xff]
    %v73 = vld [vmem:[%s0 + $0x78] sm:$0xff]
    %v74 = vld [vmem:[#allocation2] sm:$0xff]
    %v75 = vld [vmem:[#allocation2 + $0x8] sm:$0xff]
    %v76 = vld [vmem:[#allocation2 + $0x10] sm:$0xff]
    %v77 = vld [vmem:[#allocation2 + $0x18] sm:$0xff]
    %v78 = vld [vmem:[#allocation2 + $0x20] sm:$0xff]
    %v79 = vld [vmem:[#allocation2 + $0x28] sm:$0xff]
    %v80 = vld [vmem:[#allocation2 + $0x30] sm:$0xff]
    %v81 = vld [vmem:[#allocation2 + $0x38] sm:$0xff]
    %v82 = vld [vmem:[#allocation2 + $0x40] sm:$0xff]
    %v83 = vld [vmem:[#allocation2 + $0x48] sm:$0xff]
    %v84 = vld [vmem:[#allocation2 + $0x50] sm:$0xff]
    %v85 = vld [vmem:[#allocation2 + $0x58] sm:$0xff]
    %v86 = vld [vmem:[#allocation2 + $0x60] sm:$0xff]
    %v87 = vld [vmem:[#allocation2 + $0x68] sm:$0xff]
    %v88 = vld [vmem:[#allocation2 + $0x70] sm:$0xff]
    %v89 = vld [vmem:[#allocation2 + $0x78] sm:$0xff]
    %90 = vmatprep.subr.mxu0 0.0
    %v91 = vand.u32 %v74, 4294901760
    %92 = vmatpush1.xpose.msra.mxu0 %v91
    %93 = vmatprep.subr.mxu0 0.0
    %v94 = vand.u32 %v75, 4294901760
    %95 = vmatpush1.xpose.msra.mxu0 %v94
    %96 = vmatprep.subr.mxu0 0.0
    %v97 = vand.u32 %v76, 4294901760
    %98 = vmatpush1.xpose.msra.mxu0 %v97
    %99 = vmatprep.subr.mxu0 0.0
    %v100 = vand.u32 %v77, 4294901760
    %101 = vmatpush1.xpose.msra.mxu0 %v100
    %102 = vmatprep.subr.mxu0 0.0
    %v103 = vand.u32 %v78, 4294901760
    %104 = vmatpush1.xpose.msra.mxu0 %v103
    %105 = vmatprep.subr.mxu0 0.0
    %v106 = vand.u32 %v79, 4294901760
    %107 = vmatpush1.xpose.msra.mxu0 %v106
    %108 = vmatprep.subr.mxu0 0.0
    %v109 = vand.u32 %v80, 4294901760
    %110 = vmatpush1.xpose.msra.mxu0 %v109
    %111 = vmatprep.subr.mxu0 0.0
    %v112 = vand.u32 %v81, 4294901760
    %113 = vmatpush1.xpose.msra.mxu0 %v112
    %114 = vmatprep.subr.mxu0 0.0
    %v115 = vand.u32 %v82, 4294901760
    %116 = vmatpush1.xpose.msra.mxu0 %v115
    %117 = vmatprep.subr.mxu0 0.0
    %v118 = vand.u32 %v83, 4294901760
    %119 = vmatpush1.xpose.msra.mxu0 %v118
    %120 = vmatprep.subr.mxu0 0.0
    %v121 = vand.u32 %v84, 4294901760
    %122 = vmatpush1.xpose.msra.mxu0 %v121
    %123 = vmatprep.subr.mxu0 0.0
    %v124 = vand.u32 %v85, 4294901760
    %125 = vmatpush1.xpose.msra.mxu0 %v124
    %126 = vmatprep.subr.mxu0 0.0
    %v127 = vand.u32 %v86, 4294901760
    %128 = vmatpush1.xpose.msra.mxu0 %v127
    %129 = vmatprep.subr.mxu0 0.0
    %v130 = vand.u32 %v87, 4294901760
    %131 = vmatpush1.xpose.msra.mxu0 %v130
    %132 = vmatprep.subr.mxu0 0.0
    %v133 = vand.u32 %v88, 4294901760
    %134 = vmatpush1.xpose.msra.mxu0 %v133
    %135 = vmatprep.subr.mxu0 0.0
    %v136 = vand.u32 %v89, 4294901760
    %137 = vmatpush1.xpose.msra.mxu0 %v136
    %138 = vmatprep.subr.mxu0 0.0
    %139 = vmatpush1.xpose.msra.mxu0 0.0
    %140 = vmatprep.subr.mxu0 0.0
    %141 = vmatpush1.xpose.msra.mxu0 0.0
    %142 = vmatprep.subr.mxu0 0.0
    %143 = vmatpush1.xpose.msra.mxu0 0.0
    %144 = vmatprep.subr.mxu0 0.0
    %145 = vmatpush1.xpose.msra.mxu0 0.0
    %146 = vmatprep.subr.mxu0 0.0
    %147 = vmatpush1.xpose.msra.mxu0 0.0
    %148 = vmatprep.subr.mxu0 0.0
    %149 = vmatpush1.xpose.msra.mxu0 0.0
    %150 = vmatprep.subr.mxu0 0.0
    %151 = vmatpush1.xpose.msra.mxu0 0.0
    %152 = vmatprep.subr.mxu0 0.0
    %153 = vmatpush1.xpose.msra.mxu0 0.0
    %154 = vmatprep.subr.mxu0 0.0
    %155 = vmatpush1.xpose.msra.mxu0 0.0
    %156 = vmatprep.subr.mxu0 0.0
    %157 = vmatpush1.xpose.msra.mxu0 0.0
    %158 = vmatprep.subr.mxu0 0.0
    %159 = vmatpush1.xpose.msra.mxu0 0.0
    %160 = vmatprep.subr.mxu0 0.0
    %161 = vmatpush1.xpose.msra.mxu0 0.0
    %162 = vmatprep.subr.mxu0 0.0
    %163 = vmatpush1.xpose.msra.mxu0 0.0
    %164 = vmatprep.subr.mxu0 0.0
    %165 = vmatpush1.xpose.msra.mxu0 0.0
    %166 = vmatprep.subr.mxu0 0.0
    %167 = vmatpush1.xpose.msra.mxu0 0.0
    %168 = vmatprep.subr.mxu0 0.0
    %169 = vmatpush1.xpose.msra.mxu0 0.0
    %170 = vmatprep.mubr.f32.mxu0 0.0
    %v171 = vand.u32 %v58, 4294901760
    %v172 = vsub.f32 %v58, %v171
    %v173 = vand.u32 %v172, 4294901760
    %v174 = vsub.f32 %v172, %v173
    %v175 = vand.u32 %v174, 4294901760
    %176 = vmatmul.mubr.f32.gmra.mrb[0].mxu0 %v175
    %v177 = vpop.f32.mrb[0].mxu0
    %v178 = vadd.f32 0.0, %v177
    %v179 = vpop.f32.mrb[0].mxu0
    %180 = vmatprep.mubr.f32.mxu0 0.0
    %v181 = vand.u32 %v59, 4294901760
    %v182 = vsub.f32 %v59, %v181
    %v183 = vand.u32 %v182, 4294901760
    %v184 = vsub.f32 %v182, %v183
    %v185 = vand.u32 %v184, 4294901760
    %186 = vmatmul.mubr.f32.gmra.mrb[0].mxu0 %v185
    %v187 = vpop.f32.mrb[0].mxu0
    %v188 = vadd.f32 0.0, %v187
    %v189 = vpop.f32.mrb[0].mxu0
    %190 = vmatprep.mubr.f32.mxu0 0.0
    %v191 = vand.u32 %v60, 4294901760
    %v192 = vsub.f32 %v60, %v191
    %v193 = vand.u32 %v192, 4294901760
    %v194 = vsub.f32 %v192, %v193
    %v195 = vand.u32 %v194, 4294901760
    %196 = vmatmul.mubr.f32.gmra.mrb[0].mxu0 %v195
    %v197 = vpop.f32.mrb[0].mxu0
    %v198 = vadd.f32 0.0, %v197
    %v199 = vpop.f32.mrb[0].mxu0
    %200 = vmatprep.mubr.f32.mxu0 0.0
    %v201 = vand.u32 %v61, 4294901760
    %v202 = vsub.f32 %v61, %v201
    %v203 = vand.u32 %v202, 4294901760
    %v204 = vsub.f32 %v202, %v203
    %v205 = vand.u32 %v204, 4294901760
    %206 = vmatmul.mubr.f32.gmra.mrb[0].mxu0 %v205
    %v207 = vpop.f32.mrb[0].mxu0
    %v208 = vadd.f32 0.0, %v207
    %v209 = vpop.f32.mrb[0].mxu0
    %210 = vmatprep.mubr.f32.mxu0 0.0
    %v211 = vand.u32 %v62, 4294901760
    %v212 = vsub.f32 %v62, %v211
    %v213 = vand.u32 %v212, 4294901760
    %v214 = vsub.f32 %v212, %v213
    %v215 = vand.u32 %v214, 4294901760
    %216 = vmatmul.mubr.f32.gmra.mrb[0].mxu0 %v215
    %v217 = vpop.f32.mrb[0].mxu0
    %v218 = vadd.f32 0.0, %v217
    %v219 = vpop.f32.mrb[0].mxu0
    %220 = vmatprep.mubr.f32.mxu0 0.0
    %v221 = vand.u32 %v63, 4294901760
    %v222 = vsub.f32 %v63, %v221
    %v223 = vand.u32 %v222, 4294901760
    %v224 = vsub.f32 %v222, %v223
    %v225 = vand.u32 %v224, 4294901760
    %226 = vmatmul.mubr.f32.gmra.mrb[0].mxu0 %v225
    %v227 = vpop.f32.mrb[0].mxu0
    %v228 = vadd.f32 0.0, %v227
    %v229 = vpop.f32.mrb[0].mxu0
    %230 = vmatprep.mubr.f32.mxu0 0.0
    %v231 = vand.u32 %v64, 4294901760
    %v232 = vsub.f32 %v64, %v231
    %v233 = vand.u32 %v232, 4294901760
    %v234 = vsub.f32 %v232, %v233
    %v235 = vand.u32 %v234, 4294901760
    %236 = vmatmul.mubr.f32.gmra.mrb[0].mxu0 %v235
    %v237 = vpop.f32.mrb[0].mxu0
    %v238 = vadd.f32 0.0, %v237
    %v239 = vpop.f32.mrb[0].mxu0
    %240 = vmatprep.mubr.f32.mxu0 0.0
    %v241 = vand.u32 %v65, 4294901760
    %v242 = vsub.f32 %v65, %v241
    %v243 = vand.u32 %v242, 4294901760
    %v244 = vsub.f32 %v242, %v243
    %v245 = vand.u32 %v244, 4294901760
    %246 = vmatmul.mubr.f32.gmra.mrb[0].mxu0 %v245
    %v247 = vpop.f32.mrb[0].mxu0
    %v248 = vadd.f32 0.0, %v247
    %v249 = vpop.f32.mrb[0].mxu0
    %250 = vmatprep.mubr.f32.mxu0 0.0
    %v251 = vand.u32 %v66, 4294901760
    %v252 = vsub.f32 %v66, %v251
    %v253 = vand.u32 %v252, 4294901760
    %v254 = vsub.f32 %v252, %v253
    %v255 = vand.u32 %v254, 4294901760
    %256 = vmatmul.mubr.f32.gmra.mrb[0].mxu0 %v255
    %v257 = vpop.f32.mrb[0].mxu0
    %v258 = vadd.f32 0.0, %v257
    %v259 = vpop.f32.mrb[0].mxu0
    %260 = vmatprep.mubr.f32.mxu0 0.0
    %v261 = vand.u32 %v67, 4294901760
    %v262 = vsub.f32 %v67, %v261
    %v263 = vand.u32 %v262, 4294901760
    %v264 = vsub.f32 %v262, %v263
    %v265 = vand.u32 %v264, 4294901760
    %266 = vmatmul.mubr.f32.gmra.mrb[0].mxu0 %v265
    %v267 = vpop.f32.mrb[0].mxu0
    %v268 = vadd.f32 0.0, %v267
    %v269 = vpop.f32.mrb[0].mxu0
    %270 = vmatprep.mubr.f32.mxu0 0.0
    %v271 = vand.u32 %v68, 4294901760
    %v272 = vsub.f32 %v68, %v271
    %v273 = vand.u32 %v272, 4294901760
    %v274 = vsub.f32 %v272, %v273
    %v275 = vand.u32 %v274, 4294901760
    %276 = vmatmul.mubr.f32.gmra.mrb[0].mxu0 %v275
    %v277 = vpop.f32.mrb[0].mxu0
    %v278 = vadd.f32 0.0, %v277
    %v279 = vpop.f32.mrb[0].mxu0
    %280 = vmatprep.mubr.f32.mxu0 0.0
    %v281 = vand.u32 %v69, 4294901760
    %v282 = vsub.f32 %v69, %v281
    %v283 = vand.u32 %v282, 4294901760
    %v284 = vsub.f32 %v282, %v283
    %v285 = vand.u32 %v284, 4294901760
    %286 = vmatmul.mubr.f32.gmra.mrb[0].mxu0 %v285
    %v287 = vpop.f32.mrb[0].mxu0
    %v288 = vadd.f32 0.0, %v287
    %v289 = vpop.f32.mrb[0].mxu0
    %290 = vmatprep.mubr.f32.mxu0 0.0
    %v291 = vand.u32 %v70, 4294901760
    %v292 = vsub.f32 %v70, %v291
    %v293 = vand.u32 %v292, 4294901760
    %v294 = vsub.f32 %v292, %v293
    %v295 = vand.u32 %v294, 4294901760
    %296 = vmatmul.mubr.f32.gmra.mrb[0].mxu0 %v295
    %v297 = vpop.f32.mrb[0].mxu0
    %v298 = vadd.f32 0.0, %v297
    %v299 = vpop.f32.mrb[0].mxu0
    %300 = vmatprep.mubr.f32.mxu0 0.0
    %v301 = vand.u32 %v71, 4294901760
    %v302 = vsub.f32 %v71, %v301
    %v303 = vand.u32 %v302, 4294901760
    %v304 = vsub.f32 %v302, %v303
    %v305 = vand.u32 %v304, 4294901760
    %306 = vmatmul.mubr.f32.gmra.mrb[0].mxu0 %v305
    %v307 = vpop.f32.mrb[0].mxu0
    %v308 = vadd.f32 0.0, %v307
    %v309 = vpop.f32.mrb[0].mxu0
    %310 = vmatprep.mubr.f32.mxu0 0.0
    %v311 = vand.u32 %v72, 4294901760
    %v312 = vsub.f32 %v72, %v311
    %v313 = vand.u32 %v312, 4294901760
    %v314 = vsub.f32 %v312, %v313
    %v315 = vand.u32 %v314, 4294901760
    %316 = vmatmul.mubr.f32.gmra.mrb[0].mxu0 %v315
    %v317 = vpop.f32.mrb[0].mxu0
    %v318 = vadd.f32 0.0, %v317
    %v319 = vpop.f32.mrb[0].mxu0
    %320 = vmatprep.mubr.f32.mxu0 0.0
    %v321 = vand.u32 %v73, 4294901760
    %v322 = vsub.f32 %v73, %v321
    %v323 = vand.u32 %v322, 4294901760
    %v324 = vsub.f32 %v322, %v323
    %v325 = vand.u32 %v324, 4294901760
    %326 = vmatmul.mubr.f32.gmra.mrb[0].mxu0 %v325
    %v327 = vpop.f32.mrb[0].mxu0
    %v328 = vadd.f32 0.0, %v327
    %v329 = vpop.f32.mrb[0].mxu0
    %330 = vdwg.mxu0
    %331 = vmatprep.subr.mxu0 0.0
    %v332 = vand.u32 %v74, 4294901760
    %v333 = vsub.f32 %v74, %v332
    %v334 = vand.u32 %v333, 4294901760
    %v335 = vsub.f32 %v333, %v334
    %v336 = vand.u32 %v335, 4294901760
    %337 = vmatpush1.xpose.msra.mxu0 %v336
    %338 = vmatprep.subr.mxu0 0.0
    %v339 = vand.u32 %v75, 4294901760
    %v340 = vsub.f32 %v75, %v339
    %v341 = vand.u32 %v340, 4294901760
    %v342 = vsub.f32 %v340, %v341
    %v343 = vand.u32 %v342, 4294901760
    %344 = vmatpush1.xpose.msra.mxu0 %v343
    %345 = vmatprep.subr.mxu0 0.0
    %v346 = vand.u32 %v76, 4294901760
    %v347 = vsub.f32 %v76, %v346
    %v348 = vand.u32 %v347, 4294901760
    %v349 = vsub.f32 %v347, %v348
    %v350 = vand.u32 %v349, 4294901760
    %351 = vmatpush1.xpose.msra.mxu0 %v350
    %352 = vmatprep.subr.mxu0 0.0
    %v353 = vand.u32 %v77, 4294901760
    %v354 = vsub.f32 %v77, %v353
    %v355 = vand.u32 %v354, 4294901760
    %v356 = vsub.f32 %v354, %v355
    %v357 = vand.u32 %v356, 4294901760
    %358 = vmatpush1.xpose.msra.mxu0 %v357
    %359 = vmatprep.subr.mxu0 0.0
    %v360 = vand.u32 %v78, 4294901760
    %v361 = vsub.f32 %v78, %v360
    %v362 = vand.u32 %v361, 4294901760
    %v363 = vsub.f32 %v361, %v362
    %v364 = vand.u32 %v363, 4294901760
    %365 = vmatpush1.xpose.msra.mxu0 %v364
    %366 = vmatprep.subr.mxu0 0.0
    %v367 = vand.u32 %v79, 4294901760
    %v368 = vsub.f32 %v79, %v367
    %v369 = vand.u32 %v368, 4294901760
    %v370 = vsub.f32 %v368, %v369
    %v371 = vand.u32 %v370, 4294901760
    %372 = vmatpush1.xpose.msra.mxu0 %v371
    %373 = vmatprep.subr.mxu0 0.0
    %v374 = vand.u32 %v80, 4294901760
    %v375 = vsub.f32 %v80, %v374
    %v376 = vand.u32 %v375, 4294901760
    %v377 = vsub.f32 %v375, %v376
    %v378 = vand.u32 %v377, 4294901760
    %379 = vmatpush1.xpose.msra.mxu0 %v378
    %380 = vmatprep.subr.mxu0 0.0
    %v381 = vand.u32 %v81, 4294901760
    %v382 = vsub.f32 %v81, %v381
    %v383 = vand.u32 %v382, 4294901760
    %v384 = vsub.f32 %v382, %v383
    %v385 = vand.u32 %v384, 4294901760
    %386 = vmatpush1.xpose.msra.mxu0 %v385
    %387 = vmatprep.subr.mxu0 0.0
    %v388 = vand.u32 %v82, 4294901760
    %v389 = vsub.f32 %v82, %v388
    %v390 = vand.u32 %v389, 4294901760
    %v391 = vsub.f32 %v389, %v390
    %v392 = vand.u32 %v391, 4294901760
    %393 = vmatpush1.xpose.msra.mxu0 %v392
    %394 = vmatprep.subr.mxu0 0.0
    %v395 = vand.u32 %v83, 4294901760
    %v396 = vsub.f32 %v83, %v395
    %v397 = vand.u32 %v396, 4294901760
    %v398 = vsub.f32 %v396, %v397
    %v399 = vand.u32 %v398, 4294901760
    %400 = vmatpush1.xpose.msra.mxu0 %v399
    %401 = vmatprep.subr.mxu0 0.0
    %v402 = vand.u32 %v84, 4294901760
    %v403 = vsub.f32 %v84, %v402
    %v404 = vand.u32 %v403, 4294901760
    %v405 = vsub.f32 %v403, %v404
    %v406 = vand.u32 %v405, 4294901760
    %407 = vmatpush1.xpose.msra.mxu0 %v406
    %408 = vmatprep.subr.mxu0 0.0
    %v409 = vand.u32 %v85, 4294901760
    %v410 = vsub.f32 %v85, %v409
    %v411 = vand.u32 %v410, 4294901760
    %v412 = vsub.f32 %v410, %v411
    %v413 = vand.u32 %v412, 4294901760
    %414 = vmatpush1.xpose.msra.mxu0 %v413
    %415 = vmatprep.subr.mxu0 0.0
    %v416 = vand.u32 %v86, 4294901760
    %v417 = vsub.f32 %v86, %v416
    %v418 = vand.u32 %v417, 4294901760
    %v419 = vsub.f32 %v417, %v418
    %v420 = vand.u32 %v419, 4294901760
    %421 = vmatpush1.xpose.msra.mxu0 %v420
    %422 = vmatprep.subr.mxu0 0.0
    %v423 = vand.u32 %v87, 4294901760
    %v424 = vsub.f32 %v87, %v423
    %v425 = vand.u32 %v424, 4294901760
    %v426 = vsub.f32 %v424, %v425
    %v427 = vand.u32 %v426, 4294901760
    %428 = vmatpush1.xpose.msra.mxu0 %v427
    %429 = vmatprep.subr.mxu0 0.0
    %v430 = vand.u32 %v88, 4294901760
    %v431 = vsub.f32 %v88, %v430
    %v432 = vand.u32 %v431, 4294901760
    %v433 = vsub.f32 %v431, %v432
    %v434 = vand.u32 %v433, 4294901760
    %435 = vmatpush1.xpose.msra.mxu0 %v434
    %436 = vmatprep.subr.mxu0 0.0
    %v437 = vand.u32 %v89, 4294901760
    %v438 = vsub.f32 %v89, %v437
    %v439 = vand.u32 %v438, 4294901760
    %v440 = vsub.f32 %v438, %v439
    %v441 = vand.u32 %v440, 4294901760
    %442 = vmatpush1.xpose.msra.mxu0 %v441
    %443 = vmatprep.subr.mxu0 0.0
    %444 = vmatpush1.xpose.msra.mxu0 0.0
    %445 = vmatprep.subr.mxu0 0.0
    %446 = vmatpush1.xpose.msra.mxu0 0.0
    %447 = vmatprep.subr.mxu0 0.0
    %448 = vmatpush1.xpose.msra.mxu0 0.0
    %449 = vmatprep.subr.mxu0 0.0
    %450 = vmatpush1.xpose.msra.mxu0 0.0
    %451 = vmatprep.subr.mxu0 0.0
    %452 = vmatpush1.xpose.msra.mxu0 0.0
    %453 = vmatprep.subr.mxu0 0.0
    %454 = vmatpush1.xpose.msra.mxu0 0.0
    %455 = vmatprep.subr.mxu0 0.0
    %456 = vmatpush1.xpose.msra.mxu0 0.0
    %457 = vmatprep.subr.mxu0 0.0
    %458 = vmatpush1.xpose.msra.mxu0 0.0
    %459 = vmatprep.subr.mxu0 0.0
    %460 = vmatpush1.xpose.msra.mxu0 0.0
    %461 = vmatprep.subr.mxu0 0.0
    %462 = vmatpush1.xpose.msra.mxu0 0.0
    %463 = vmatprep.subr.mxu0 0.0
    %464 = vmatpush1.xpose.msra.mxu0 0.0
    %465 = vmatprep.subr.mxu0 0.0
    %466 = vmatpush1.xpose.msra.mxu0 0.0
    %467 = vmatprep.subr.mxu0 0.0
    %468 = vmatpush1.xpose.msra.mxu0 0.0
    %469 = vmatprep.subr.mxu0 0.0
    %470 = vmatpush1.xpose.msra.mxu0 0.0
    %471 = vmatprep.subr.mxu0 0.0
    %472 = vmatpush1.xpose.msra.mxu0 0.0
    %473 = vmatprep.subr.mxu0 0.0
    %474 = vmatpush1.xpose.msra.mxu0 0.0
    %475 = vmatprep.mubr.f32.mxu0 0.0
    %v476 = vand.u32 %v58, 4294901760
    %477 = vmatmul.mubr.f32.gmra.mrb[0].mxu0 %v476
    %v478 = vpop.f32.mrb[0].mxu0
    %v479 = vadd.f32 %v178, %v478
    %v480 = vpop.f32.mrb[0].mxu0
    %481 = vmatprep.mubr.f32.mxu0 0.0
    %v482 = vand.u32 %v59, 4294901760
    %483 = vmatmul.mubr.f32.gmra.mrb[0].mxu0 %v482
    %v484 = vpop.f32.mrb[0].mxu0
    %v485 = vadd.f32 %v188, %v484
    %v486 = vpop.f32.mrb[0].mxu0
    %487 = vmatprep.mubr.f32.mxu0 0.0
    %v488 = vand.u32 %v60, 4294901760
    %489 = vmatmul.mubr.f32.gmra.mrb[0].mxu0 %v488
    %v490 = vpop.f32.mrb[0].mxu0
    %v491 = vadd.f32 %v198, %v490
    %v492 = vpop.f32.mrb[0].mxu0
    %493 = vmatprep.mubr.f32.mxu0 0.0
    %v494 = vand.u32 %v61, 4294901760
    %495 = vmatmul.mubr.f32.gmra.mrb[0].mxu0 %v494
    %v496 = vpop.f32.mrb[0].mxu0
    %v497 = vadd.f32 %v208, %v496
    %v498 = vpop.f32.mrb[0].mxu0
    %499 = vmatprep.mubr.f32.mxu0 0.0
    %v500 = vand.u32 %v62, 4294901760
    %501 = vmatmul.mubr.f32.gmra.mrb[0].mxu0 %v500
    %v502 = vpop.f32.mrb[0].mxu0
    %v503 = vadd.f32 %v218, %v502
    %v504 = vpop.f32.mrb[0].mxu0
    %505 = vmatprep.mubr.f32.mxu0 0.0
    %v506 = vand.u32 %v63, 4294901760
    %507 = vmatmul.mubr.f32.gmra.mrb[0].mxu0 %v506
    %v508 = vpop.f32.mrb[0].mxu0
    %v509 = vadd.f32 %v228, %v508
    %v510 = vpop.f32.mrb[0].mxu0
    %511 = vmatprep.mubr.f32.mxu0 0.0
    %v512 = vand.u32 %v64, 4294901760
    %513 = vmatmul.mubr.f32.gmra.mrb[0].mxu0 %v512
    %v514 = vpop.f32.mrb[0].mxu0
    %v515 = vadd.f32 %v238, %v514
    %v516 = vpop.f32.mrb[0].mxu0
    %517 = vmatprep.mubr.f32.mxu0 0.0
    %v518 = vand.u32 %v65, 4294901760
    %519 = vmatmul.mubr.f32.gmra.mrb[0].mxu0 %v518
    %v520 = vpop.f32.mrb[0].mxu0
    %v521 = vadd.f32 %v248, %v520
    %v522 = vpop.f32.mrb[0].mxu0
    %523 = vmatprep.mubr.f32.mxu0 0.0
    %v524 = vand.u32 %v66, 4294901760
    %525 = vmatmul.mubr.f32.gmra.mrb[0].mxu0 %v524
    %v526 = vpop.f32.mrb[0].mxu0
    %v527 = vadd.f32 %v258, %v526
    %v528 = vpop.f32.mrb[0].mxu0
    %529 = vmatprep.mubr.f32.mxu0 0.0
    %v530 = vand.u32 %v67, 4294901760
    %531 = vmatmul.mubr.f32.gmra.mrb[0].mxu0 %v530
    %v532 = vpop.f32.mrb[0].mxu0
    %v533 = vadd.f32 %v268, %v532
    %v534 = vpop.f32.mrb[0].mxu0
    %535 = vmatprep.mubr.f32.mxu0 0.0
    %v536 = vand.u32 %v68, 4294901760
    %537 = vmatmul.mubr.f32.gmra.mrb[0].mxu0 %v536
    %v538 = vpop.f32.mrb[0].mxu0
    %v539 = vadd.f32 %v278, %v538
    %v540 = vpop.f32.mrb[0].mxu0
    %541 = vmatprep.mubr.f32.mxu0 0.0
    %v542 = vand.u32 %v69, 4294901760
    %543 = vmatmul.mubr.f32.gmra.mrb[0].mxu0 %v542
    %v544 = vpop.f32.mrb[0].mxu0
    %v545 = vadd.f32 %v288, %v544
    %v546 = vpop.f32.mrb[0].mxu0
    %547 = vmatprep.mubr.f32.mxu0 0.0
    %v548 = vand.u32 %v70, 4294901760
    %549 = vmatmul.mubr.f32.gmra.mrb[0].mxu0 %v548
    %v550 = vpop.f32.mrb[0].mxu0
    %v551 = vadd.f32 %v298, %v550
    %v552 = vpop.f32.mrb[0].mxu0
    %553 = vmatprep.mubr.f32.mxu0 0.0
    %v554 = vand.u32 %v71, 4294901760
    %555 = vmatmul.mubr.f32.gmra.mrb[0].mxu0 %v554
    %v556 = vpop.f32.mrb[0].mxu0
    %v557 = vadd.f32 %v308, %v556
    %v558 = vpop.f32.mrb[0].mxu0
    %559 = vmatprep.mubr.f32.mxu0 0.0
    %v560 = vand.u32 %v72, 4294901760
    %561 = vmatmul.mubr.f32.gmra.mrb[0].mxu0 %v560
    %v562 = vpop.f32.mrb[0].mxu0
    %v563 = vadd.f32 %v318, %v562
    %v564 = vpop.f32.mrb[0].mxu0
    %565 = vmatprep.mubr.f32.mxu0 0.0
    %v566 = vand.u32 %v73, 4294901760
    %567 = vmatmul.mubr.f32.gmra.mrb[0].mxu0 %v566
    %v568 = vpop.f32.mrb[0].mxu0
    %v569 = vadd.f32 %v328, %v568
    %v570 = vpop.f32.mrb[0].mxu0
    %571 = vdwg.mxu0
    %572 = vmatprep.subr.mxu0 0.0
    %v573 = vand.u32 %v74, 4294901760
    %v574 = vsub.f32 %v74, %v573
    %575 = vmatpush1.xpose.msra.mxu0 %v574
    %576 = vmatprep.subr.mxu0 0.0
    %v577 = vand.u32 %v75, 4294901760
    %v578 = vsub.f32 %v75, %v577
    %579 = vmatpush1.xpose.msra.mxu0 %v578
    %580 = vmatprep.subr.mxu0 0.0
    %v581 = vand.u32 %v76, 4294901760
    %v582 = vsub.f32 %v76, %v581
    %583 = vmatpush1.xpose.msra.mxu0 %v582
    %584 = vmatprep.subr.mxu0 0.0
    %v585 = vand.u32 %v77, 4294901760
    %v586 = vsub.f32 %v77, %v585
    %587 = vmatpush1.xpose.msra.mxu0 %v586
    %588 = vmatprep.subr.mxu0 0.0
    %v589 = vand.u32 %v78, 4294901760
    %v590 = vsub.f32 %v78, %v589
    %591 = vmatpush1.xpose.msra.mxu0 %v590
    %592 = vmatprep.subr.mxu0 0.0
    %v593 = vand.u32 %v79, 4294901760
    %v594 = vsub.f32 %v79, %v593
    %595 = vmatpush1.xpose.msra.mxu0 %v594
    %596 = vmatprep.subr.mxu0 0.0
    %v597 = vand.u32 %v80, 4294901760
    %v598 = vsub.f32 %v80, %v597
    %599 = vmatpush1.xpose.msra.mxu0 %v598
    %600 = vmatprep.subr.mxu0 0.0
    %v601 = vand.u32 %v81, 4294901760
    %v602 = vsub.f32 %v81, %v601
    %603 = vmatpush1.xpose.msra.mxu0 %v602
    %604 = vmatprep.subr.mxu0 0.0
    %v605 = vand.u32 %v82, 4294901760
    %v606 = vsub.f32 %v82, %v605
    %607 = vmatpush1.xpose.msra.mxu0 %v606
    %608 = vmatprep.subr.mxu0 0.0
    %v609 = vand.u32 %v83, 4294901760
    %v610 = vsub.f32 %v83, %v609
    %611 = vmatpush1.xpose.msra.mxu0 %v610
    %612 = vmatprep.subr.mxu0 0.0
    %v613 = vand.u32 %v84, 4294901760
    %v614 = vsub.f32 %v84, %v613
    %615 = vmatpush1.xpose.msra.mxu0 %v614
    %616 = vmatprep.subr.mxu0 0.0
    %v617 = vand.u32 %v85, 4294901760
    %v618 = vsub.f32 %v85, %v617
    %619 = vmatpush1.xpose.msra.mxu0 %v618
    %620 = vmatprep.subr.mxu0 0.0
    %v621 = vand.u32 %v86, 4294901760
    %v622 = vsub.f32 %v86, %v621
    %623 = vmatpush1.xpose.msra.mxu0 %v622
    %624 = vmatprep.subr.mxu0 0.0
    %v625 = vand.u32 %v87, 4294901760
    %v626 = vsub.f32 %v87, %v625
    %627 = vmatpush1.xpose.msra.mxu0 %v626
    %628 = vmatprep.subr.mxu0 0.0
    %v629 = vand.u32 %v88, 4294901760
    %v630 = vsub.f32 %v88, %v629
    %631 = vmatpush1.xpose.msra.mxu0 %v630
    %632 = vmatprep.subr.mxu0 0.0
    %v633 = vand.u32 %v89, 4294901760
    %v634 = vsub.f32 %v89, %v633
    %635 = vmatpush1.xpose.msra.mxu0 %v634
    %636 = vmatprep.subr.mxu0 0.0
    %637 = vmatpush1.xpose.msra.mxu0 0.0
    %638 = vmatprep.subr.mxu0 0.0
    %639 = vmatpush1.xpose.msra.mxu0 0.0
    %640 = vmatprep.subr.mxu0 0.0
    %641 = vmatpush1.xpose.msra.mxu0 0.0
    %642 = vmatprep.subr.mxu0 0.0
    %643 = vmatpush1.xpose.msra.mxu0 0.0
    %644 = vmatprep.subr.mxu0 0.0
    %645 = vmatpush1.xpose.msra.mxu0 0.0
    %646 = vmatprep.subr.mxu0 0.0
    %647 = vmatpush1.xpose.msra.mxu0 0.0
    %648 = vmatprep.subr.mxu0 0.0
    %649 = vmatpush1.xpose.msra.mxu0 0.0
    %650 = vmatprep.subr.mxu0 0.0
    %651 = vmatpush1.xpose.msra.mxu0 0.0
    %652 = vmatprep.subr.mxu0 0.0
    %653 = vmatpush1.xpose.msra.mxu0 0.0
    %654 = vmatprep.subr.mxu0 0.0
    %655 = vmatpush1.xpose.msra.mxu0 0.0
    %656 = vmatprep.subr.mxu0 0.0
    %657 = vmatpush1.xpose.msra.mxu0 0.0
    %658 = vmatprep.subr.mxu0 0.0
    %659 = vmatpush1.xpose.msra.mxu0 0.0
    %660 = vmatprep.subr.mxu0 0.0
    %661 = vmatpush1.xpose.msra.mxu0 0.0
    %662 = vmatprep.subr.mxu0 0.0
    %663 = vmatpush1.xpose.msra.mxu0 0.0
    %664 = vmatprep.subr.mxu0 0.0
    %665 = vmatpush1.xpose.msra.mxu0 0.0
    %666 = vmatprep.subr.mxu0 0.0
    %667 = vmatpush1.xpose.msra.mxu0 0.0
    %668 = vmatprep.mubr.f32.mxu0 0.0
    %v669 = vand.u32 %v58, 4294901760
    %v670 = vsub.f32 %v58, %v669
    %671 = vmatmul.mubr.f32.gmra.mrb[0].mxu0 %v670
    %v672 = vpop.f32.mrb[0].mxu0
    %v673 = vadd.f32 %v479, %v672
    %v674 = vpop.f32.mrb[0].mxu0
    %675 = vmatprep.mubr.f32.mxu0 0.0
    %v676 = vand.u32 %v59, 4294901760
    %v677 = vsub.f32 %v59, %v676
    %678 = vmatmul.mubr.f32.gmra.mrb[0].mxu0 %v677
    %v679 = vpop.f32.mrb[0].mxu0
    %v680 = vadd.f32 %v485, %v679
    %v681 = vpop.f32.mrb[0].mxu0
    %682 = vmatprep.mubr.f32.mxu0 0.0
    %v683 = vand.u32 %v60, 4294901760
    %v684 = vsub.f32 %v60, %v683
    %685 = vmatmul.mubr.f32.gmra.mrb[0].mxu0 %v684
    %v686 = vpop.f32.mrb[0].mxu0
    %v687 = vadd.f32 %v491, %v686
    %v688 = vpop.f32.mrb[0].mxu0
    %689 = vmatprep.mubr.f32.mxu0 0.0
    %v690 = vand.u32 %v61, 4294901760
    %v691 = vsub.f32 %v61, %v690
    %692 = vmatmul.mubr.f32.gmra.mrb[0].mxu0 %v691
    %v693 = vpop.f32.mrb[0].mxu0
    %v694 = vadd.f32 %v497, %v693
    %v695 = vpop.f32.mrb[0].mxu0
    %696 = vmatprep.mubr.f32.mxu0 0.0
    %v697 = vand.u32 %v62, 4294901760
    %v698 = vsub.f32 %v62, %v697
    %699 = vmatmul.mubr.f32.gmra.mrb[0].mxu0 %v698
    %v700 = vpop.f32.mrb[0].mxu0
    %v701 = vadd.f32 %v503, %v700
    %v702 = vpop.f32.mrb[0].mxu0
    %703 = vmatprep.mubr.f32.mxu0 0.0
    %v704 = vand.u32 %v63, 4294901760
    %v705 = vsub.f32 %v63, %v704
    %706 = vmatmul.mubr.f32.gmra.mrb[0].mxu0 %v705
    %v707 = vpop.f32.mrb[0].mxu0
    %v708 = vadd.f32 %v509, %v707
    %v709 = vpop.f32.mrb[0].mxu0
    %710 = vmatprep.mubr.f32.mxu0 0.0
    %v711 = vand.u32 %v64, 4294901760
    %v712 = vsub.f32 %v64, %v711
    %713 = vmatmul.mubr.f32.gmra.mrb[0].mxu0 %v712
    %v714 = vpop.f32.mrb[0].mxu0
    %v715 = vadd.f32 %v515, %v714
    %v716 = vpop.f32.mrb[0].mxu0
    %717 = vmatprep.mubr.f32.mxu0 0.0
    %v718 = vand.u32 %v65, 4294901760
    %v719 = vsub.f32 %v65, %v718
    %720 = vmatmul.mubr.f32.gmra.mrb[0].mxu0 %v719
    %v721 = vpop.f32.mrb[0].mxu0
    %v722 = vadd.f32 %v521, %v721
    %v723 = vpop.f32.mrb[0].mxu0
    %724 = vmatprep.mubr.f32.mxu0 0.0
    %v725 = vand.u32 %v66, 4294901760
    %v726 = vsub.f32 %v66, %v725
    %727 = vmatmul.mubr.f32.gmra.mrb[0].mxu0 %v726
    %v728 = vpop.f32.mrb[0].mxu0
    %v729 = vadd.f32 %v527, %v728
    %v730 = vpop.f32.mrb[0].mxu0
    %731 = vmatprep.mubr.f32.mxu0 0.0
    %v732 = vand.u32 %v67, 4294901760
    %v733 = vsub.f32 %v67, %v732
    %734 = vmatmul.mubr.f32.gmra.mrb[0].mxu0 %v733
    %v735 = vpop.f32.mrb[0].mxu0
    %v736 = vadd.f32 %v533, %v735
    %v737 = vpop.f32.mrb[0].mxu0
    %738 = vmatprep.mubr.f32.mxu0 0.0
    %v739 = vand.u32 %v68, 4294901760
    %v740 = vsub.f32 %v68, %v739
    %741 = vmatmul.mubr.f32.gmra.mrb[0].mxu0 %v740
    %v742 = vpop.f32.mrb[0].mxu0
    %v743 = vadd.f32 %v539, %v742
    %v744 = vpop.f32.mrb[0].mxu0
    %745 = vmatprep.mubr.f32.mxu0 0.0
    %v746 = vand.u32 %v69, 4294901760
    %v747 = vsub.f32 %v69, %v746
    %748 = vmatmul.mubr.f32.gmra.mrb[0].mxu0 %v747
    %v749 = vpop.f32.mrb[0].mxu0
    %v750 = vadd.f32 %v545, %v749
    %v751 = vpop.f32.mrb[0].mxu0
    %752 = vmatprep.mubr.f32.mxu0 0.0
    %v753 = vand.u32 %v70, 4294901760
    %v754 = vsub.f32 %v70, %v753
    %755 = vmatmul.mubr.f32.gmra.mrb[0].mxu0 %v754
    %v756 = vpop.f32.mrb[0].mxu0
    %v757 = vadd.f32 %v551, %v756
    %v758 = vpop.f32.mrb[0].mxu0
    %759 = vmatprep.mubr.f32.mxu0 0.0
    %v760 = vand.u32 %v71, 4294901760
    %v761 = vsub.f32 %v71, %v760
    %762 = vmatmul.mubr.f32.gmra.mrb[0].mxu0 %v761
    %v763 = vpop.f32.mrb[0].mxu0
    %v764 = vadd.f32 %v557, %v763
    %v765 = vpop.f32.mrb[0].mxu0
    %766 = vmatprep.mubr.f32.mxu0 0.0
    %v767 = vand.u32 %v72, 4294901760
    %v768 = vsub.f32 %v72, %v767
    %769 = vmatmul.mubr.f32.gmra.mrb[0].mxu0 %v768
    %v770 = vpop.f32.mrb[0].mxu0
    %v771 = vadd.f32 %v563, %v770
    %v772 = vpop.f32.mrb[0].mxu0
    %773 = vmatprep.mubr.f32.mxu0 0.0
    %v774 = vand.u32 %v73, 4294901760
    %v775 = vsub.f32 %v73, %v774
    %776 = vmatmul.mubr.f32.gmra.mrb[0].mxu0 %v775
    %v777 = vpop.f32.mrb[0].mxu0
    %v778 = vadd.f32 %v569, %v777
    %v779 = vpop.f32.mrb[0].mxu0
    %780 = vdwg.mxu0
    %781 = vmatprep.subr.mxu0 0.0
    %v782 = vand.u32 %v74, 4294901760
    %783 = vmatpush1.xpose.msra.mxu0 %v782
    %784 = vmatprep.subr.mxu0 0.0
    %v785 = vand.u32 %v75, 4294901760
    %786 = vmatpush1.xpose.msra.mxu0 %v785
    %787 = vmatprep.subr.mxu0 0.0
    %v788 = vand.u32 %v76, 4294901760
    %789 = vmatpush1.xpose.msra.mxu0 %v788
    %790 = vmatprep.subr.mxu0 0.0
    %v791 = vand.u32 %v77, 4294901760
    %792 = vmatpush1.xpose.msra.mxu0 %v791
    %793 = vmatprep.subr.mxu0 0.0
    %v794 = vand.u32 %v78, 4294901760
    %795 = vmatpush1.xpose.msra.mxu0 %v794
    %796 = vmatprep.subr.mxu0 0.0
    %v797 = vand.u32 %v79, 4294901760
    %798 = vmatpush1.xpose.msra.mxu0 %v797
    %799 = vmatprep.subr.mxu0 0.0
    %v800 = vand.u32 %v80, 4294901760
    %801 = vmatpush1.xpose.msra.mxu0 %v800
    %802 = vmatprep.subr.mxu0 0.0
    %v803 = vand.u32 %v81, 4294901760
    %804 = vmatpush1.xpose.msra.mxu0 %v803
    %805 = vmatprep.subr.mxu0 0.0
    %v806 = vand.u32 %v82, 4294901760
    %807 = vmatpush1.xpose.msra.mxu0 %v806
    %808 = vmatprep.subr.mxu0 0.0
    %v809 = vand.u32 %v83, 4294901760
    %810 = vmatpush1.xpose.msra.mxu0 %v809
    %811 = vmatprep.subr.mxu0 0.0
    %v812 = vand.u32 %v84, 4294901760
    %813 = vmatpush1.xpose.msra.mxu0 %v812
    %814 = vmatprep.subr.mxu0 0.0
    %v815 = vand.u32 %v85, 4294901760
    %816 = vmatpush1.xpose.msra.mxu0 %v815
    %817 = vmatprep.subr.mxu0 0.0
    %v818 = vand.u32 %v86, 4294901760
    %819 = vmatpush1.xpose.msra.mxu0 %v818
    %820 = vmatprep.subr.mxu0 0.0
    %v821 = vand.u32 %v87, 4294901760
    %822 = vmatpush1.xpose.msra.mxu0 %v821
    %823 = vmatprep.subr.mxu0 0.0
    %v824 = vand.u32 %v88, 4294901760
    %825 = vmatpush1.xpose.msra.mxu0 %v824
    %826 = vmatprep.subr.mxu0 0.0
    %v827 = vand.u32 %v89, 4294901760
    %828 = vmatpush1.xpose.msra.mxu0 %v827
    %829 = vmatprep.subr.mxu0 0.0
    %830 = vmatpush1.xpose.msra.mxu0 0.0
    %831 = vmatprep.subr.mxu0 0.0
    %832 = vmatpush1.xpose.msra.mxu0 0.0
    %833 = vmatprep.subr.mxu0 0.0
    %834 = vmatpush1.xpose.msra.mxu0 0.0
    %835 = vmatprep.subr.mxu0 0.0
    %836 = vmatpush1.xpose.msra.mxu0 0.0
    %837 = vmatprep.subr.mxu0 0.0
    %838 = vmatpush1.xpose.msra.mxu0 0.0
    %839 = vmatprep.subr.mxu0 0.0
    %840 = vmatpush1.xpose.msra.mxu0 0.0
    %841 = vmatprep.subr.mxu0 0.0
    %842 = vmatpush1.xpose.msra.mxu0 0.0
    %843 = vmatprep.subr.mxu0 0.0
    %844 = vmatpush1.xpose.msra.mxu0 0.0
    %845 = vmatprep.subr.mxu0 0.0
    %846 = vmatpush1.xpose.msra.mxu0 0.0
    %847 = vmatprep.subr.mxu0 0.0
    %848 = vmatpush1.xpose.msra.mxu0 0.0
    %849 = vmatprep.subr.mxu0 0.0
    %850 = vmatpush1.xpose.msra.mxu0 0.0
    %851 = vmatprep.subr.mxu0 0.0
    %852 = vmatpush1.xpose.msra.mxu0 0.0
    %853 = vmatprep.subr.mxu0 0.0
    %854 = vmatpush1.xpose.msra.mxu0 0.0
    %855 = vmatprep.subr.mxu0 0.0
    %856 = vmatpush1.xpose.msra.mxu0 0.0
    %857 = vmatprep.subr.mxu0 0.0
    %858 = vmatpush1.xpose.msra.mxu0 0.0
    %859 = vmatprep.subr.mxu0 0.0
    %860 = vmatpush1.xpose.msra.mxu0 0.0
    %861 = vmatprep.mubr.f32.mxu0 0.0
    %v862 = vand.u32 %v58, 4294901760
    %v863 = vsub.f32 %v58, %v862
    %v864 = vand.u32 %v863, 4294901760
    %865 = vmatmul.mubr.f32.gmra.mrb[0].mxu0 %v864
    %v866 = vpop.f32.mrb[0].mxu0
    %v867 = vadd.f32 %v673, %v866
    %v868 = vpop.f32.mrb[0].mxu0
    %869 = vmatprep.mubr.f32.mxu0 0.0
    %v870 = vand.u32 %v59, 4294901760
    %v871 = vsub.f32 %v59, %v870
    %v872 = vand.u32 %v871, 4294901760
    %873 = vmatmul.mubr.f32.gmra.mrb[0].mxu0 %v872
    %v874 = vpop.f32.mrb[0].mxu0
    %v875 = vadd.f32 %v680, %v874
    %v876 = vpop.f32.mrb[0].mxu0
    %877 = vmatprep.mubr.f32.mxu0 0.0
    %v878 = vand.u32 %v60, 4294901760
    %v879 = vsub.f32 %v60, %v878
    %v880 = vand.u32 %v879, 4294901760
    %881 = vmatmul.mubr.f32.gmra.mrb[0].mxu0 %v880
    %v882 = vpop.f32.mrb[0].mxu0
    %v883 = vadd.f32 %v687, %v882
    %v884 = vpop.f32.mrb[0].mxu0
    %885 = vmatprep.mubr.f32.mxu0 0.0
    %v886 = vand.u32 %v61, 4294901760
    %v887 = vsub.f32 %v61, %v886
    %v888 = vand.u32 %v887, 4294901760
    %889 = vmatmul.mubr.f32.gmra.mrb[0].mxu0 %v888
    %v890 = vpop.f32.mrb[0].mxu0
    %v891 = vadd.f32 %v694, %v890
    %v892 = vpop.f32.mrb[0].mxu0
    %893 = vmatprep.mubr.f32.mxu0 0.0
    %v894 = vand.u32 %v62, 4294901760
    %v895 = vsub.f32 %v62, %v894
    %v896 = vand.u32 %v895, 4294901760
    %897 = vmatmul.mubr.f32.gmra.mrb[0].mxu0 %v896
    %v898 = vpop.f32.mrb[0].mxu0
    %v899 = vadd.f32 %v701, %v898
    %v900 = vpop.f32.mrb[0].mxu0
    %901 = vmatprep.mubr.f32.mxu0 0.0
    %v902 = vand.u32 %v63, 4294901760
    %v903 = vsub.f32 %v63, %v902
    %v904 = vand.u32 %v903, 4294901760
    %905 = vmatmul.mubr.f32.gmra.mrb[0].mxu0 %v904
    %v906 = vpop.f32.mrb[0].mxu0
    %v907 = vadd.f32 %v708, %v906
    %v908 = vpop.f32.mrb[0].mxu0
    %909 = vmatprep.mubr.f32.mxu0 0.0
    %v910 = vand.u32 %v64, 4294901760
    %v911 = vsub.f32 %v64, %v910
    %v912 = vand.u32 %v911, 4294901760
    %913 = vmatmul.mubr.f32.gmra.mrb[0].mxu0 %v912
    %v914 = vpop.f32.mrb[0].mxu0
    %v915 = vadd.f32 %v715, %v914
    %v916 = vpop.f32.mrb[0].mxu0
    %917 = vmatprep.mubr.f32.mxu0 0.0
    %v918 = vand.u32 %v65, 4294901760
    %v919 = vsub.f32 %v65, %v918
    %v920 = vand.u32 %v919, 4294901760
    %921 = vmatmul.mubr.f32.gmra.mrb[0].mxu0 %v920
    %v922 = vpop.f32.mrb[0].mxu0
    %v923 = vadd.f32 %v722, %v922
    %v924 = vpop.f32.mrb[0].mxu0
    %925 = vmatprep.mubr.f32.mxu0 0.0
    %v926 = vand.u32 %v66, 4294901760
    %v927 = vsub.f32 %v66, %v926
    %v928 = vand.u32 %v927, 4294901760
    %929 = vmatmul.mubr.f32.gmra.mrb[0].mxu0 %v928
    %v930 = vpop.f32.mrb[0].mxu0
    %v931 = vadd.f32 %v729, %v930
    %v932 = vpop.f32.mrb[0].mxu0
    %933 = vmatprep.mubr.f32.mxu0 0.0
    %v934 = vand.u32 %v67, 4294901760
    %v935 = vsub.f32 %v67, %v934
    %v936 = vand.u32 %v935, 4294901760
    %937 = vmatmul.mubr.f32.gmra.mrb[0].mxu0 %v936
    %v938 = vpop.f32.mrb[0].mxu0
    %v939 = vadd.f32 %v736, %v938
    %v940 = vpop.f32.mrb[0].mxu0
    %941 = vmatprep.mubr.f32.mxu0 0.0
    %v942 = vand.u32 %v68, 4294901760
    %v943 = vsub.f32 %v68, %v942
    %v944 = vand.u32 %v943, 4294901760
    %945 = vmatmul.mubr.f32.gmra.mrb[0].mxu0 %v944
    %v946 = vpop.f32.mrb[0].mxu0
    %v947 = vadd.f32 %v743, %v946
    %v948 = vpop.f32.mrb[0].mxu0
    %949 = vmatprep.mubr.f32.mxu0 0.0
    %v950 = vand.u32 %v69, 4294901760
    %v951 = vsub.f32 %v69, %v950
    %v952 = vand.u32 %v951, 4294901760
    %953 = vmatmul.mubr.f32.gmra.mrb[0].mxu0 %v952
    %v954 = vpop.f32.mrb[0].mxu0
    %v955 = vadd.f32 %v750, %v954
    %v956 = vpop.f32.mrb[0].mxu0
    %957 = vmatprep.mubr.f32.mxu0 0.0
    %v958 = vand.u32 %v70, 4294901760
    %v959 = vsub.f32 %v70, %v958
    %v960 = vand.u32 %v959, 4294901760
    %961 = vmatmul.mubr.f32.gmra.mrb[0].mxu0 %v960
    %v962 = vpop.f32.mrb[0].mxu0
    %v963 = vadd.f32 %v757, %v962
    %v964 = vpop.f32.mrb[0].mxu0
    %965 = vmatprep.mubr.f32.mxu0 0.0
    %v966 = vand.u32 %v71, 4294901760
    %v967 = vsub.f32 %v71, %v966
    %v968 = vand.u32 %v967, 4294901760
    %969 = vmatmul.mubr.f32.gmra.mrb[0].mxu0 %v968
    %v970 = vpop.f32.mrb[0].mxu0
    %v971 = vadd.f32 %v764, %v970
    %v972 = vpop.f32.mrb[0].mxu0
    %973 = vmatprep.mubr.f32.mxu0 0.0
    %v974 = vand.u32 %v72, 4294901760
    %v975 = vsub.f32 %v72, %v974
    %v976 = vand.u32 %v975, 4294901760
    %977 = vmatmul.mubr.f32.gmra.mrb[0].mxu0 %v976
    %v978 = vpop.f32.mrb[0].mxu0
    %v979 = vadd.f32 %v771, %v978
    %v980 = vpop.f32.mrb[0].mxu0
    %981 = vmatprep.mubr.f32.mxu0 0.0
    %v982 = vand.u32 %v73, 4294901760
    %v983 = vsub.f32 %v73, %v982
    %v984 = vand.u32 %v983, 4294901760
    %985 = vmatmul.mubr.f32.gmra.mrb[0].mxu0 %v984
    %v986 = vpop.f32.mrb[0].mxu0
    %v987 = vadd.f32 %v778, %v986
    %v988 = vpop.f32.mrb[0].mxu0
    %989 = vdwg.mxu0
    %990 = vmatprep.subr.mxu0 0.0
    %v991 = vand.u32 %v74, 4294901760
    %v992 = vsub.f32 %v74, %v991
    %v993 = vand.u32 %v992, 4294901760
    %994 = vmatpush1.xpose.msra.mxu0 %v993
    %995 = vmatprep.subr.mxu0 0.0
    %v996 = vand.u32 %v75, 4294901760
    %v997 = vsub.f32 %v75, %v996
    %v998 = vand.u32 %v997, 4294901760
    %999 = vmatpush1.xpose.msra.mxu0 %v998
    %1000 = vmatprep.subr.mxu0 0.0
    %v1001 = vand.u32 %v76, 4294901760
    %v1002 = vsub.f32 %v76, %v1001
    %v1003 = vand.u32 %v1002, 4294901760
    %1004 = vmatpush1.xpose.msra.mxu0 %v1003
    %1005 = vmatprep.subr.mxu0 0.0
    %v1006 = vand.u32 %v77, 4294901760
    %v1007 = vsub.f32 %v77, %v1006
    %v1008 = vand.u32 %v1007, 4294901760
    %1009 = vmatpush1.xpose.msra.mxu0 %v1008
    %1010 = vmatprep.subr.mxu0 0.0
    %v1011 = vand.u32 %v78, 4294901760
    %v1012 = vsub.f32 %v78, %v1011
    %v1013 = vand.u32 %v1012, 4294901760
    %1014 = vmatpush1.xpose.msra.mxu0 %v1013
    %1015 = vmatprep.subr.mxu0 0.0
    %v1016 = vand.u32 %v79, 4294901760
    %v1017 = vsub.f32 %v79, %v1016
    %v1018 = vand.u32 %v1017, 4294901760
    %1019 = vmatpush1.xpose.msra.mxu0 %v1018
    %1020 = vmatprep.subr.mxu0 0.0
    %v1021 = vand.u32 %v80, 4294901760
    %v1022 = vsub.f32 %v80, %v1021
    %v1023 = vand.u32 %v1022, 4294901760
    %1024 = vmatpush1.xpose.msra.mxu0 %v1023
    %1025 = vmatprep.subr.mxu0 0.0
    %v1026 = vand.u32 %v81, 4294901760
    %v1027 = vsub.f32 %v81, %v1026
    %v1028 = vand.u32 %v1027, 4294901760
    %1029 = vmatpush1.xpose.msra.mxu0 %v1028
    %1030 = vmatprep.subr.mxu0 0.0
    %v1031 = vand.u32 %v82, 4294901760
    %v1032 = vsub.f32 %v82, %v1031
    %v1033 = vand.u32 %v1032, 4294901760
    %1034 = vmatpush1.xpose.msra.mxu0 %v1033
    %1035 = vmatprep.subr.mxu0 0.0
    %v1036 = vand.u32 %v83, 4294901760
    %v1037 = vsub.f32 %v83, %v1036
    %v1038 = vand.u32 %v1037, 4294901760
    %1039 = vmatpush1.xpose.msra.mxu0 %v1038
    %1040 = vmatprep.subr.mxu0 0.0
    %v1041 = vand.u32 %v84, 4294901760
    %v1042 = vsub.f32 %v84, %v1041
    %v1043 = vand.u32 %v1042, 4294901760
    %1044 = vmatpush1.xpose.msra.mxu0 %v1043
    %1045 = vmatprep.subr.mxu0 0.0
    %v1046 = vand.u32 %v85, 4294901760
    %v1047 = vsub.f32 %v85, %v1046
    %v1048 = vand.u32 %v1047, 4294901760
    %1049 = vmatpush1.xpose.msra.mxu0 %v1048
    %1050 = vmatprep.subr.mxu0 0.0
    %v1051 = vand.u32 %v86, 4294901760
    %v1052 = vsub.f32 %v86, %v1051
    %v1053 = vand.u32 %v1052, 4294901760
    %1054 = vmatpush1.xpose.msra.mxu0 %v1053
    %1055 = vmatprep.subr.mxu0 0.0
    %v1056 = vand.u32 %v87, 4294901760
    %v1057 = vsub.f32 %v87, %v1056
    %v1058 = vand.u32 %v1057, 4294901760
    %1059 = vmatpush1.xpose.msra.mxu0 %v1058
    %1060 = vmatprep.subr.mxu0 0.0
    %v1061 = vand.u32 %v88, 4294901760
    %v1062 = vsub.f32 %v88, %v1061
    %v1063 = vand.u32 %v1062, 4294901760
    %1064 = vmatpush1.xpose.msra.mxu0 %v1063
    %1065 = vmatprep.subr.mxu0 0.0
    %v1066 = vand.u32 %v89, 4294901760
    %v1067 = vsub.f32 %v89, %v1066
    %v1068 = vand.u32 %v1067, 4294901760
    %1069 = vmatpush1.xpose.msra.mxu0 %v1068
    %1070 = vmatprep.subr.mxu0 0.0
    %1071 = vmatpush1.xpose.msra.mxu0 0.0
    %1072 = vmatprep.subr.mxu0 0.0
    %1073 = vmatpush1.xpose.msra.mxu0 0.0
    %1074 = vmatprep.subr.mxu0 0.0
    %1075 = vmatpush1.xpose.msra.mxu0 0.0
    %1076 = vmatprep.subr.mxu0 0.0
    %1077 = vmatpush1.xpose.msra.mxu0 0.0
    %1078 = vmatprep.subr.mxu0 0.0
    %1079 = vmatpush1.xpose.msra.mxu0 0.0
    %1080 = vmatprep.subr.mxu0 0.0
    %1081 = vmatpush1.xpose.msra.mxu0 0.0
    %1082 = vmatprep.subr.mxu0 0.0
    %1083 = vmatpush1.xpose.msra.mxu0 0.0
    %1084 = vmatprep.subr.mxu0 0.0
    %1085 = vmatpush1.xpose.msra.mxu0 0.0
    %1086 = vmatprep.subr.mxu0 0.0
    %1087 = vmatpush1.xpose.msra.mxu0 0.0
    %1088 = vmatprep.subr.mxu0 0.0
    %1089 = vmatpush1.xpose.msra.mxu0 0.0
    %1090 = vmatprep.subr.mxu0 0.0
    %1091 = vmatpush1.xpose.msra.mxu0 0.0
    %1092 = vmatprep.subr.mxu0 0.0
    %1093 = vmatpush1.xpose.msra.mxu0 0.0
    %1094 = vmatprep.subr.mxu0 0.0
    %1095 = vmatpush1.xpose.msra.mxu0 0.0
    %1096 = vmatprep.subr.mxu0 0.0
    %1097 = vmatpush1.xpose.msra.mxu0 0.0
    %1098 = vmatprep.subr.mxu0 0.0
    %1099 = vmatpush1.xpose.msra.mxu0 0.0
    %1100 = vmatprep.subr.mxu0 0.0
    %1101 = vmatpush1.xpose.msra.mxu0 0.0
    %1102 = vmatprep.mubr.f32.mxu0 0.0
    %v1103 = vand.u32 %v58, 4294901760
    %1104 = vmatmul.mubr.f32.gmra.mrb[0].mxu0 %v1103
    %v1105 = vpop.f32.mrb[0].mxu0
    %v1106 = vadd.f32 %v867, %v1105
    %v1107 = vpop.f32.mrb[0].mxu0
    %1108 = vmatprep.mubr.f32.mxu0 0.0
    %v1109 = vand.u32 %v59, 4294901760
    %1110 = vmatmul.mubr.f32.gmra.mrb[0].mxu0 %v1109
    %v1111 = vpop.f32.mrb[0].mxu0
    %v1112 = vadd.f32 %v875, %v1111
    %v1113 = vpop.f32.mrb[0].mxu0
    %1114 = vmatprep.mubr.f32.mxu0 0.0
    %v1115 = vand.u32 %v60, 4294901760
    %1116 = vmatmul.mubr.f32.gmra.mrb[0].mxu0 %v1115
    %v1117 = vpop.f32.mrb[0].mxu0
    %v1118 = vadd.f32 %v883, %v1117
    %v1119 = vpop.f32.mrb[0].mxu0
    %1120 = vmatprep.mubr.f32.mxu0 0.0
    %v1121 = vand.u32 %v61, 4294901760
    %1122 = vmatmul.mubr.f32.gmra.mrb[0].mxu0 %v1121
    %v1123 = vpop.f32.mrb[0].mxu0
    %v1124 = vadd.f32 %v891, %v1123
    %v1125 = vpop.f32.mrb[0].mxu0
    %1126 = vmatprep.mubr.f32.mxu0 0.0
    %v1127 = vand.u32 %v62, 4294901760
    %1128 = vmatmul.mubr.f32.gmra.mrb[0].mxu0 %v1127
    %v1129 = vpop.f32.mrb[0].mxu0
    %v1130 = vadd.f32 %v899, %v1129
    %v1131 = vpop.f32.mrb[0].mxu0
    %1132 = vmatprep.mubr.f32.mxu0 0.0
    %v1133 = vand.u32 %v63, 4294901760
    %1134 = vmatmul.mubr.f32.gmra.mrb[0].mxu0 %v1133
    %v1135 = vpop.f32.mrb[0].mxu0
    %v1136 = vadd.f32 %v907, %v1135
    %v1137 = vpop.f32.mrb[0].mxu0
    %1138 = vmatprep.mubr.f32.mxu0 0.0
    %v1139 = vand.u32 %v64, 4294901760
    %1140 = vmatmul.mubr.f32.gmra.mrb[0].mxu0 %v1139
    %v1141 = vpop.f32.mrb[0].mxu0
    %v1142 = vadd.f32 %v915, %v1141
    %v1143 = vpop.f32.mrb[0].mxu0
    %1144 = vmatprep.mubr.f32.mxu0 0.0
    %v1145 = vand.u32 %v65, 4294901760
    %1146 = vmatmul.mubr.f32.gmra.mrb[0].mxu0 %v1145
    %v1147 = vpop.f32.mrb[0].mxu0
    %v1148 = vadd.f32 %v923, %v1147
    %v1149 = vpop.f32.mrb[0].mxu0
    %1150 = vmatprep.mubr.f32.mxu0 0.0
    %v1151 = vand.u32 %v66, 4294901760
    %1152 = vmatmul.mubr.f32.gmra.mrb[0].mxu0 %v1151
    %v1153 = vpop.f32.mrb[0].mxu0
    %v1154 = vadd.f32 %v931, %v1153
    %v1155 = vpop.f32.mrb[0].mxu0
    %1156 = vmatprep.mubr.f32.mxu0 0.0
    %v1157 = vand.u32 %v67, 4294901760
    %1158 = vmatmul.mubr.f32.gmra.mrb[0].mxu0 %v1157
    %v1159 = vpop.f32.mrb[0].mxu0
    %v1160 = vadd.f32 %v939, %v1159
    %v1161 = vpop.f32.mrb[0].mxu0
    %1162 = vmatprep.mubr.f32.mxu0 0.0
    %v1163 = vand.u32 %v68, 4294901760
    %1164 = vmatmul.mubr.f32.gmra.mrb[0].mxu0 %v1163
    %v1165 = vpop.f32.mrb[0].mxu0
    %v1166 = vadd.f32 %v947, %v1165
    %v1167 = vpop.f32.mrb[0].mxu0
    %1168 = vmatprep.mubr.f32.mxu0 0.0
    %v1169 = vand.u32 %v69, 4294901760
    %1170 = vmatmul.mubr.f32.gmra.mrb[0].mxu0 %v1169
    %v1171 = vpop.f32.mrb[0].mxu0
    %v1172 = vadd.f32 %v955, %v1171
    %v1173 = vpop.f32.mrb[0].mxu0
    %1174 = vmatprep.mubr.f32.mxu0 0.0
    %v1175 = vand.u32 %v70, 4294901760
    %1176 = vmatmul.mubr.f32.gmra.mrb[0].mxu0 %v1175
    %v1177 = vpop.f32.mrb[0].mxu0
    %v1178 = vadd.f32 %v963, %v1177
    %v1179 = vpop.f32.mrb[0].mxu0
    %1180 = vmatprep.mubr.f32.mxu0 0.0
    %v1181 = vand.u32 %v71, 4294901760
    %1182 = vmatmul.mubr.f32.gmra.mrb[0].mxu0 %v1181
    %v1183 = vpop.f32.mrb[0].mxu0
    %v1184 = vadd.f32 %v971, %v1183
    %v1185 = vpop.f32.mrb[0].mxu0
    %1186 = vmatprep.mubr.f32.mxu0 0.0
    %v1187 = vand.u32 %v72, 4294901760
    %1188 = vmatmul.mubr.f32.gmra.mrb[0].mxu0 %v1187
    %v1189 = vpop.f32.mrb[0].mxu0
    %v1190 = vadd.f32 %v979, %v1189
    %v1191 = vpop.f32.mrb[0].mxu0
    %1192 = vmatprep.mubr.f32.mxu0 0.0
    %v1193 = vand.u32 %v73, 4294901760
    %1194 = vmatmul.mubr.f32.gmra.mrb[0].mxu0 %v1193
    %v1195 = vpop.f32.mrb[0].mxu0
    %v1196 = vadd.f32 %v987, %v1195
    %v1197 = vpop.f32.mrb[0].mxu0
    %1198 = vdwg.mxu0
    %1199 = vmatprep.subr.mxu0 0.0
    %v1200 = vand.u32 %v74, 4294901760
    %1201 = vmatpush1.xpose.msra.mxu0 %v1200
    %1202 = vmatprep.subr.mxu0 0.0
    %v1203 = vand.u32 %v75, 4294901760
    %1204 = vmatpush1.xpose.msra.mxu0 %v1203
    %1205 = vmatprep.subr.mxu0 0.0
    %v1206 = vand.u32 %v76, 4294901760
    %1207 = vmatpush1.xpose.msra.mxu0 %v1206
    %1208 = vmatprep.subr.mxu0 0.0
    %v1209 = vand.u32 %v77, 4294901760
    %1210 = vmatpush1.xpose.msra.mxu0 %v1209
    %1211 = vmatprep.subr.mxu0 0.0
    %v1212 = vand.u32 %v78, 4294901760
    %1213 = vmatpush1.xpose.msra.mxu0 %v1212
    %1214 = vmatprep.subr.mxu0 0.0
    %v1215 = vand.u32 %v79, 4294901760
    %1216 = vmatpush1.xpose.msra.mxu0 %v1215
    %1217 = vmatprep.subr.mxu0 0.0
    %v1218 = vand.u32 %v80, 4294901760
    %1219 = vmatpush1.xpose.msra.mxu0 %v1218
    %1220 = vmatprep.subr.mxu0 0.0
    %v1221 = vand.u32 %v81, 4294901760
    %1222 = vmatpush1.xpose.msra.mxu0 %v1221
    %1223 = vmatprep.subr.mxu0 0.0
    %v1224 = vand.u32 %v82, 4294901760
    %1225 = vmatpush1.xpose.msra.mxu0 %v1224
    %1226 = vmatprep.subr.mxu0 0.0
    %v1227 = vand.u32 %v83, 4294901760
    %1228 = vmatpush1.xpose.msra.mxu0 %v1227
    %1229 = vmatprep.subr.mxu0 0.0
    %v1230 = vand.u32 %v84, 4294901760
    %1231 = vmatpush1.xpose.msra.mxu0 %v1230
    %1232 = vmatprep.subr.mxu0 0.0
    %v1233 = vand.u32 %v85, 4294901760
    %1234 = vmatpush1.xpose.msra.mxu0 %v1233
    %1235 = vmatprep.subr.mxu0 0.0
    %v1236 = vand.u32 %v86, 4294901760
    %1237 = vmatpush1.xpose.msra.mxu0 %v1236
    %1238 = vmatprep.subr.mxu0 0.0
    %v1239 = vand.u32 %v87, 4294901760
    %1240 = vmatpush1.xpose.msra.mxu0 %v1239
    %1241 = vmatprep.subr.mxu0 0.0
    %v1242 = vand.u32 %v88, 4294901760
    %1243 = vmatpush1.xpose.msra.mxu0 %v1242
    %1244 = vmatprep.subr.mxu0 0.0
    %v1245 = vand.u32 %v89, 4294901760
    %1246 = vmatpush1.xpose.msra.mxu0 %v1245
    %1247 = vmatprep.subr.mxu0 0.0
    %1248 = vmatpush1.xpose.msra.mxu0 0.0
    %1249 = vmatprep.subr.mxu0 0.0
    %1250 = vmatpush1.xpose.msra.mxu0 0.0
    %1251 = vmatprep.subr.mxu0 0.0
    %1252 = vmatpush1.xpose.msra.mxu0 0.0
    %1253 = vmatprep.subr.mxu0 0.0
    %1254 = vmatpush1.xpose.msra.mxu0 0.0
    %1255 = vmatprep.subr.mxu0 0.0
    %1256 = vmatpush1.xpose.msra.mxu0 0.0
    %1257 = vmatprep.subr.mxu0 0.0
    %1258 = vmatpush1.xpose.msra.mxu0 0.0
    %1259 = vmatprep.subr.mxu0 0.0
    %1260 = vmatpush1.xpose.msra.mxu0 0.0
    %1261 = vmatprep.subr.mxu0 0.0
    %1262 = vmatpush1.xpose.msra.mxu0 0.0
    %1263 = vmatprep.subr.mxu0 0.0
    %1264 = vmatpush1.xpose.msra.mxu0 0.0
    %1265 = vmatprep.subr.mxu0 0.0
    %1266 = vmatpush1.xpose.msra.mxu0 0.0
    %1267 = vmatprep.subr.mxu0 0.0
    %1268 = vmatpush1.xpose.msra.mxu0 0.0
    %1269 = vmatprep.subr.mxu0 0.0
    %1270 = vmatpush1.xpose.msra.mxu0 0.0
    %1271 = vmatprep.subr.mxu0 0.0
    %1272 = vmatpush1.xpose.msra.mxu0 0.0
    %1273 = vmatprep.subr.mxu0 0.0
    %1274 = vmatpush1.xpose.msra.mxu0 0.0
    %1275 = vmatprep.subr.mxu0 0.0
    %1276 = vmatpush1.xpose.msra.mxu0 0.0
    %1277 = vmatprep.subr.mxu0 0.0
    %1278 = vmatpush1.xpose.msra.mxu0 0.0
    %1279 = vmatprep.mubr.f32.mxu0 0.0
    %v1280 = vand.u32 %v58, 4294901760
    %1281 = vmatmul.mubr.f32.gmra.mrb[0].mxu0 %v1280
    %v1282 = vpop.f32.mrb[0].mxu0
    %v1283 = vadd.f32 %v1106, %v1282
    %v1284 = vpop.f32.mrb[0].mxu0
    %1285 = vmatprep.mubr.f32.mxu0 0.0
    %v1286 = vand.u32 %v59, 4294901760
    %1287 = vmatmul.mubr.f32.gmra.mrb[0].mxu0 %v1286
    %v1288 = vpop.f32.mrb[0].mxu0
    %v1289 = vadd.f32 %v1112, %v1288
    %v1290 = vpop.f32.mrb[0].mxu0
    %1291 = vmatprep.mubr.f32.mxu0 0.0
    %v1292 = vand.u32 %v60, 4294901760
    %1293 = vmatmul.mubr.f32.gmra.mrb[0].mxu0 %v1292
    %v1294 = vpop.f32.mrb[0].mxu0
    %v1295 = vadd.f32 %v1118, %v1294
    %v1296 = vpop.f32.mrb[0].mxu0
    %1297 = vmatprep.mubr.f32.mxu0 0.0
    %v1298 = vand.u32 %v61, 4294901760
    %1299 = vmatmul.mubr.f32.gmra.mrb[0].mxu0 %v1298
    %v1300 = vpop.f32.mrb[0].mxu0
    %v1301 = vadd.f32 %v1124, %v1300
    %v1302 = vpop.f32.mrb[0].mxu0
    %1303 = vmatprep.mubr.f32.mxu0 0.0
    %v1304 = vand.u32 %v62, 4294901760
    %1305 = vmatmul.mubr.f32.gmra.mrb[0].mxu0 %v1304
    %v1306 = vpop.f32.mrb[0].mxu0
    %v1307 = vadd.f32 %v1130, %v1306
    %v1308 = vpop.f32.mrb[0].mxu0
    %1309 = vmatprep.mubr.f32.mxu0 0.0
    %v1310 = vand.u32 %v63, 4294901760
    %1311 = vmatmul.mubr.f32.gmra.mrb[0].mxu0 %v1310
    %v1312 = vpop.f32.mrb[0].mxu0
    %v1313 = vadd.f32 %v1136, %v1312
    %v1314 = vpop.f32.mrb[0].mxu0
    %1315 = vmatprep.mubr.f32.mxu0 0.0
    %v1316 = vand.u32 %v64, 4294901760
    %1317 = vmatmul.mubr.f32.gmra.mrb[0].mxu0 %v1316
    %v1318 = vpop.f32.mrb[0].mxu0
    %v1319 = vadd.f32 %v1142, %v1318
    %v1320 = vpop.f32.mrb[0].mxu0
    %1321 = vmatprep.mubr.f32.mxu0 0.0
    %v1322 = vand.u32 %v65, 4294901760
    %1323 = vmatmul.mubr.f32.gmra.mrb[0].mxu0 %v1322
    %v1324 = vpop.f32.mrb[0].mxu0
    %v1325 = vadd.f32 %v1148, %v1324
    %v1326 = vpop.f32.mrb[0].mxu0
    %1327 = vmatprep.mubr.f32.mxu0 0.0
    %v1328 = vand.u32 %v66, 4294901760
    %1329 = vmatmul.mubr.f32.gmra.mrb[0].mxu0 %v1328
    %v1330 = vpop.f32.mrb[0].mxu0
    %v1331 = vadd.f32 %v1154, %v1330
    %v1332 = vpop.f32.mrb[0].mxu0
    %1333 = vmatprep.mubr.f32.mxu0 0.0
    %v1334 = vand.u32 %v67, 4294901760
    %1335 = vmatmul.mubr.f32.gmra.mrb[0].mxu0 %v1334
    %v1336 = vpop.f32.mrb[0].mxu0
    %v1337 = vadd.f32 %v1160, %v1336
    %v1338 = vpop.f32.mrb[0].mxu0
    %1339 = vmatprep.mubr.f32.mxu0 0.0
    %v1340 = vand.u32 %v68, 4294901760
    %1341 = vmatmul.mubr.f32.gmra.mrb[0].mxu0 %v1340
    %v1342 = vpop.f32.mrb[0].mxu0
    %v1343 = vadd.f32 %v1166, %v1342
    %v1344 = vpop.f32.mrb[0].mxu0
    %1345 = vmatprep.mubr.f32.mxu0 0.0
    %v1346 = vand.u32 %v69, 4294901760
    %1347 = vmatmul.mubr.f32.gmra.mrb[0].mxu0 %v1346
    %v1348 = vpop.f32.mrb[0].mxu0
    %v1349 = vadd.f32 %v1172, %v1348
    %v1350 = vpop.f32.mrb[0].mxu0
    %1351 = vmatprep.mubr.f32.mxu0 0.0
    %v1352 = vand.u32 %v70, 4294901760
    %1353 = vmatmul.mubr.f32.gmra.mrb[0].mxu0 %v1352
    %v1354 = vpop.f32.mrb[0].mxu0
    %v1355 = vadd.f32 %v1178, %v1354
    %v1356 = vpop.f32.mrb[0].mxu0
    %1357 = vmatprep.mubr.f32.mxu0 0.0
    %v1358 = vand.u32 %v71, 4294901760
    %1359 = vmatmul.mubr.f32.gmra.mrb[0].mxu0 %v1358
    %v1360 = vpop.f32.mrb[0].mxu0
    %v1361 = vadd.f32 %v1184, %v1360
    %v1362 = vpop.f32.mrb[0].mxu0
    %1363 = vmatprep.mubr.f32.mxu0 0.0
    %v1364 = vand.u32 %v72, 4294901760
    %1365 = vmatmul.mubr.f32.gmra.mrb[0].mxu0 %v1364
    %v1366 = vpop.f32.mrb[0].mxu0
    %v1367 = vadd.f32 %v1190, %v1366
    %v1368 = vpop.f32.mrb[0].mxu0
    %1369 = vmatprep.mubr.f32.mxu0 0.0
    %v1370 = vand.u32 %v73, 4294901760
    %1371 = vmatmul.mubr.f32.gmra.mrb[0].mxu0 %v1370
    %v1372 = vpop.f32.mrb[0].mxu0
    %v1373 = vadd.f32 %v1196, %v1372
    %v1374 = vpop.f32.mrb[0].mxu0
    %1375 = vdwg.mxu0
    %v1376 = vld [vmem:[%s2] sm:$0xff]
    %v1377 = vld [vmem:[%s2 + $0x8] sm:$0xff]
    %v1378 = vld [vmem:[%s2 + $0x10] sm:$0xff]
    %v1379 = vld [vmem:[%s2 + $0x18] sm:$0xff]
    %v1380 = vld [vmem:[%s2 + $0x20] sm:$0xff]
    %v1381 = vld [vmem:[%s2 + $0x28] sm:$0xff]
    %v1382 = vld [vmem:[%s2 + $0x30] sm:$0xff]
    %v1383 = vld [vmem:[%s2 + $0x38] sm:$0xff]
    %v1384 = vld [vmem:[%s2 + $0x40] sm:$0xff]
    %v1385 = vld [vmem:[%s2 + $0x48] sm:$0xff]
    %v1386 = vld [vmem:[%s2 + $0x50] sm:$0xff]
    %v1387 = vld [vmem:[%s2 + $0x58] sm:$0xff]
    %v1388 = vld [vmem:[%s2 + $0x60] sm:$0xff]
    %v1389 = vld [vmem:[%s2 + $0x68] sm:$0xff]
    %v1390 = vld [vmem:[%s2 + $0x70] sm:$0xff]
    %v1391 = vld [vmem:[%s2 + $0x78] sm:$0xff]
    %v1392 = vld [vmem:[%s3] sm:$0x1]
    %1394 = vset.pattern.permute.xlu0 0
    %1395 = vperm.xlu0 %1394, %v1376
    %v1396 = vpop.permute.xlu0 %1395
    %1399 = vset.pattern.permute.xlu0 0
    %1400 = vperm.xlu0 %1399, %v1377
    %v1401 = vpop.permute.xlu0 %1400
    %1404 = vset.pattern.permute.xlu0 0
    %1405 = vperm.xlu0 %1404, %v1378
    %v1406 = vpop.permute.xlu0 %1405
    %1409 = vset.pattern.permute.xlu0 0
    %1410 = vperm.xlu0 %1409, %v1379
    %v1411 = vpop.permute.xlu0 %1410
    %1414 = vset.pattern.permute.xlu0 0
    %1415 = vperm.xlu0 %1414, %v1380
    %v1416 = vpop.permute.xlu0 %1415
    %1419 = vset.pattern.permute.xlu0 0
    %1420 = vperm.xlu0 %1419, %v1381
    %v1421 = vpop.permute.xlu0 %1420
    %1424 = vset.pattern.permute.xlu0 0
    %1425 = vperm.xlu0 %1424, %v1382
    %v1426 = vpop.permute.xlu0 %1425
    %1429 = vset.pattern.permute.xlu0 0
    %1430 = vperm.xlu0 %1429, %v1383
    %v1431 = vpop.permute.xlu0 %1430
    %1434 = vset.pattern.permute.xlu0 0
    %1435 = vperm.xlu0 %1434, %v1384
    %v1436 = vpop.permute.xlu0 %1435
    %1439 = vset.pattern.permute.xlu0 0
    %1440 = vperm.xlu0 %1439, %v1385
    %v1441 = vpop.permute.xlu0 %1440
    %1444 = vset.pattern.permute.xlu0 0
    %1445 = vperm.xlu0 %1444, %v1386
    %v1446 = vpop.permute.xlu0 %1445
    %1449 = vset.pattern.permute.xlu0 0
    %1450 = vperm.xlu0 %1449, %v1387
    %v1451 = vpop.permute.xlu0 %1450
    %1454 = vset.pattern.permute.xlu0 0
    %1455 = vperm.xlu0 %1454, %v1388
    %v1456 = vpop.permute.xlu0 %1455
    %1459 = vset.pattern.permute.xlu0 0
    %1460 = vperm.xlu0 %1459, %v1389
    %v1461 = vpop.permute.xlu0 %1460
    %1464 = vset.pattern.permute.xlu0 0
    %1465 = vperm.xlu0 %1464, %v1390
    %v1466 = vpop.permute.xlu0 %1465
    %1469 = vset.pattern.permute.xlu0 0
    %1470 = vperm.xlu0 %1469, %v1391
    %v1471 = vpop.permute.xlu0 %1470
    %v1474 = vlaneseq
    %v1475 = vshrl.u32 %v1474, 7
    %v1476 = vsub.s32 0, %v1475
    %v1477 = vrot.slane %v1392, %v1476
    %v1479 = vadd.f32 %v1396, %v1477
    %v1480 = vadd.f32 %v1401, %v1477
    %v1481 = vadd.f32 %v1406, %v1477
    %v1482 = vadd.f32 %v1411, %v1477
    %v1483 = vadd.f32 %v1416, %v1477
    %v1484 = vadd.f32 %v1421, %v1477
    %v1485 = vadd.f32 %v1426, %v1477
    %v1486 = vadd.f32 %v1431, %v1477
    %v1487 = vadd.f32 %v1436, %v1477
    %v1488 = vadd.f32 %v1441, %v1477
    %v1489 = vadd.f32 %v1446, %v1477
    %v1490 = vadd.f32 %v1451, %v1477
    %v1491 = vadd.f32 %v1456, %v1477
    %v1492 = vadd.f32 %v1461, %v1477
    %v1493 = vadd.f32 %v1466, %v1477
    %v1494 = vadd.f32 %v1471, %v1477
    %v1495 = vsub.f32 %v1479, %v1283
    %v1496 = vsub.f32 %v1480, %v1289
    %v1497 = vsub.f32 %v1481, %v1295
    %v1498 = vsub.f32 %v1482, %v1301
    %v1499 = vsub.f32 %v1483, %v1307
    %v1500 = vsub.f32 %v1484, %v1313
    %v1501 = vsub.f32 %v1485, %v1319
    %v1502 = vsub.f32 %v1486, %v1325
    %v1503 = vsub.f32 %v1487, %v1331
    %v1504 = vsub.f32 %v1488, %v1337
    %v1505 = vsub.f32 %v1489, %v1343
    %v1506 = vsub.f32 %v1490, %v1349
    %v1507 = vsub.f32 %v1491, %v1355
    %v1508 = vsub.f32 %v1492, %v1361
    %v1509 = vsub.f32 %v1493, %v1367
    %v1510 = vsub.f32 %v1494, %v1373
    %v1511 = vmax.f32 %v1495, 0.0
    %v1512 = vmax.f32 %v1496, 0.0
    %v1513 = vmax.f32 %v1497, 0.0
    %v1514 = vmax.f32 %v1498, 0.0
    %v1515 = vmax.f32 %v1499, 0.0
    %v1516 = vmax.f32 %v1500, 0.0
    %v1517 = vmax.f32 %v1501, 0.0
    %v1518 = vmax.f32 %v1502, 0.0
    %v1519 = vmax.f32 %v1503, 0.0
    %v1520 = vmax.f32 %v1504, 0.0
    %v1521 = vmax.f32 %v1505, 0.0
    %v1522 = vmax.f32 %v1506, 0.0
    %v1523 = vmax.f32 %v1507, 0.0
    %v1524 = vmax.f32 %v1508, 0.0
    %v1525 = vmax.f32 %v1509, 0.0
    %v1526 = vmax.f32 %v1510, 0.0
    %v1527 = vld [vmem:[#allocation5] sm:$0xff]
    %v1528 = vld [vmem:[#allocation5 + $0x8] sm:$0xff]
    %v1529 = vld [vmem:[#allocation5 + $0x10] sm:$0xff]
    %v1530 = vld [vmem:[#allocation5 + $0x18] sm:$0xff]
    %v1531 = vld [vmem:[#allocation5 + $0x20] sm:$0xff]
    %v1532 = vld [vmem:[#allocation5 + $0x28] sm:$0xff]
    %v1533 = vld [vmem:[#allocation5 + $0x30] sm:$0xff]
    %v1534 = vld [vmem:[#allocation5 + $0x38] sm:$0xff]
    %v1535 = vld [vmem:[#allocation5 + $0x40] sm:$0xff]
    %v1536 = vld [vmem:[#allocation5 + $0x48] sm:$0xff]
    %v1537 = vld [vmem:[#allocation5 + $0x50] sm:$0xff]
    %v1538 = vld [vmem:[#allocation5 + $0x58] sm:$0xff]
    %v1539 = vld [vmem:[#allocation5 + $0x60] sm:$0xff]
    %v1540 = vld [vmem:[#allocation5 + $0x68] sm:$0xff]
    %v1541 = vld [vmem:[#allocation5 + $0x70] sm:$0xff]
    %v1542 = vld [vmem:[#allocation5 + $0x78] sm:$0xff]
    %v1543 = vmul.f32 %v1511, %v1527
    %v1544 = vmul.f32 %v1512, %v1528
    %v1545 = vmul.f32 %v1513, %v1529
    %v1546 = vmul.f32 %v1514, %v1530
    %v1547 = vmul.f32 %v1515, %v1531
    %v1548 = vmul.f32 %v1516, %v1532
    %v1549 = vmul.f32 %v1517, %v1533
    %v1550 = vmul.f32 %v1518, %v1534
    %v1551 = vmul.f32 %v1519, %v1535
    %v1552 = vmul.f32 %v1520, %v1536
    %v1553 = vmul.f32 %v1521, %v1537
    %v1554 = vmul.f32 %v1522, %v1538
    %v1555 = vmul.f32 %v1523, %v1539
    %v1556 = vmul.f32 %v1524, %v1540
    %v1557 = vmul.f32 %v1525, %v1541
    %v1558 = vmul.f32 %v1526, %v1542
    %v1559 = vrsqrt.pop %v1543
    %v1560 = vmul.f32 %v1543, %v1559
    %vm1561 = vcmp.eq.f32.partialorder %v1543, inf
    %v1562 = vsel %vm1561, %v1543, %v1560
    %vm1563 = vcmp.eq.f32.partialorder %v1543, 0.0
    %v1564 = vand.u32 %v1543, 2147483648
    %v1565 = vsel %vm1563, %v1564, %v1562
    %v1566 = vrsqrt.pop %v1544
    %v1567 = vmul.f32 %v1544, %v1566
    %vm1568 = vcmp.eq.f32.partialorder %v1544, inf
    %v1569 = vsel %vm1568, %v1544, %v1567
    %vm1570 = vcmp.eq.f32.partialorder %v1544, 0.0
    %v1571 = vand.u32 %v1544, 2147483648
    %v1572 = vsel %vm1570, %v1571, %v1569
    %v1573 = vrsqrt.pop %v1545
    %v1574 = vmul.f32 %v1545, %v1573
    %vm1575 = vcmp.eq.f32.partialorder %v1545, inf
    %v1576 = vsel %vm1575, %v1545, %v1574
    %vm1577 = vcmp.eq.f32.partialorder %v1545, 0.0
    %v1578 = vand.u32 %v1545, 2147483648
    %v1579 = vsel %vm1577, %v1578, %v1576
    %v1580 = vrsqrt.pop %v1546
    %v1581 = vmul.f32 %v1546, %v1580
    %vm1582 = vcmp.eq.f32.partialorder %v1546, inf
    %v1583 = vsel %vm1582, %v1546, %v1581
    %vm1584 = vcmp.eq.f32.partialorder %v1546, 0.0
    %v1585 = vand.u32 %v1546, 2147483648
    %v1586 = vsel %vm1584, %v1585, %v1583
    %v1587 = vrsqrt.pop %v1547
    %v1588 = vmul.f32 %v1547, %v1587
    %vm1589 = vcmp.eq.f32.partialorder %v1547, inf
    %v1590 = vsel %vm1589, %v1547, %v1588
    %vm1591 = vcmp.eq.f32.partialorder %v1547, 0.0
    %v1592 = vand.u32 %v1547, 2147483648
    %v1593 = vsel %vm1591, %v1592, %v1590
    %v1594 = vrsqrt.pop %v1548
    %v1595 = vmul.f32 %v1548, %v1594
    %vm1596 = vcmp.eq.f32.partialorder %v1548, inf
    %v1597 = vsel %vm1596, %v1548, %v1595
    %vm1598 = vcmp.eq.f32.partialorder %v1548, 0.0
    %v1599 = vand.u32 %v1548, 2147483648
    %v1600 = vsel %vm1598, %v1599, %v1597
    %v1601 = vrsqrt.pop %v1549
    %v1602 = vmul.f32 %v1549, %v1601
    %vm1603 = vcmp.eq.f32.partialorder %v1549, inf
    %v1604 = vsel %vm1603, %v1549, %v1602
    %vm1605 = vcmp.eq.f32.partialorder %v1549, 0.0
    %v1606 = vand.u32 %v1549, 2147483648
    %v1607 = vsel %vm1605, %v1606, %v1604
    %v1608 = vrsqrt.pop %v1550
    %v1609 = vmul.f32 %v1550, %v1608
    %vm1610 = vcmp.eq.f32.partialorder %v1550, inf
    %v1611 = vsel %vm1610, %v1550, %v1609
    %vm1612 = vcmp.eq.f32.partialorder %v1550, 0.0
    %v1613 = vand.u32 %v1550, 2147483648
    %v1614 = vsel %vm1612, %v1613, %v1611
    %v1615 = vrsqrt.pop %v1551
    %v1616 = vmul.f32 %v1551, %v1615
    %vm1617 = vcmp.eq.f32.partialorder %v1551, inf
    %v1618 = vsel %vm1617, %v1551, %v1616
    %vm1619 = vcmp.eq.f32.partialorder %v1551, 0.0
    %v1620 = vand.u32 %v1551, 2147483648
    %v1621 = vsel %vm1619, %v1620, %v1618
    %v1622 = vrsqrt.pop %v1552
    %v1623 = vmul.f32 %v1552, %v1622
    %vm1624 = vcmp.eq.f32.partialorder %v1552, inf
    %v1625 = vsel %vm1624, %v1552, %v1623
    %vm1626 = vcmp.eq.f32.partialorder %v1552, 0.0
    %v1627 = vand.u32 %v1552, 2147483648
    %v1628 = vsel %vm1626, %v1627, %v1625
    %v1629 = vrsqrt.pop %v1553
    %v1630 = vmul.f32 %v1553, %v1629
    %vm1631 = vcmp.eq.f32.partialorder %v1553, inf
    %v1632 = vsel %vm1631, %v1553, %v1630
    %vm1633 = vcmp.eq.f32.partialorder %v1553, 0.0
    %v1634 = vand.u32 %v1553, 2147483648
    %v1635 = vsel %vm1633, %v1634, %v1632
    %v1636 = vrsqrt.pop %v1554
    %v1637 = vmul.f32 %v1554, %v1636
    %vm1638 = vcmp.eq.f32.partialorder %v1554, inf
    %v1639 = vsel %vm1638, %v1554, %v1637
    %vm1640 = vcmp.eq.f32.partialorder %v1554, 0.0
    %v1641 = vand.u32 %v1554, 2147483648
    %v1642 = vsel %vm1640, %v1641, %v1639
    %v1643 = vrsqrt.pop %v1555
    %v1644 = vmul.f32 %v1555, %v1643
    %vm1645 = vcmp.eq.f32.partialorder %v1555, inf
    %v1646 = vsel %vm1645, %v1555, %v1644
    %vm1647 = vcmp.eq.f32.partialorder %v1555, 0.0
    %v1648 = vand.u32 %v1555, 2147483648
    %v1649 = vsel %vm1647, %v1648, %v1646
    %v1650 = vrsqrt.pop %v1556
    %v1651 = vmul.f32 %v1556, %v1650
    %vm1652 = vcmp.eq.f32.partialorder %v1556, inf
    %v1653 = vsel %vm1652, %v1556, %v1651
    %vm1654 = vcmp.eq.f32.partialorder %v1556, 0.0
    %v1655 = vand.u32 %v1556, 2147483648
    %v1656 = vsel %vm1654, %v1655, %v1653
    %v1657 = vrsqrt.pop %v1557
    %v1658 = vmul.f32 %v1557, %v1657
    %vm1659 = vcmp.eq.f32.partialorder %v1557, inf
    %v1660 = vsel %vm1659, %v1557, %v1658
    %vm1661 = vcmp.eq.f32.partialorder %v1557, 0.0
    %v1662 = vand.u32 %v1557, 2147483648
    %v1663 = vsel %vm1661, %v1662, %v1660
    %v1664 = vrsqrt.pop %v1558
    %v1665 = vmul.f32 %v1558, %v1664
    %vm1666 = vcmp.eq.f32.partialorder %v1558, inf
    %v1667 = vsel %vm1666, %v1558, %v1665
    %vm1668 = vcmp.eq.f32.partialorder %v1558, 0.0
    %v1669 = vand.u32 %v1558, 2147483648
    %v1670 = vsel %vm1668, %v1669, %v1667
    %s1671 = scalar_select %p52, 1.0, 2.0
    %v1672 = vld [vmem:[#allocation7] sm:$0x1]
    %v1673 = vadd.f32 %v1565, %v1572
    %v1674 = vadd.f32 %v1673, %v1579
    %v1675 = vadd.f32 %v1674, %v1586
    %v1676 = vadd.f32 %v1675, %v1593
    %v1677 = vadd.f32 %v1676, %v1600
    %v1678 = vadd.f32 %v1677, %v1607
    %v1679 = vadd.f32 %v1678, %v1614
    %v1680 = vadd.f32 %v1679, %v1621
    %v1681 = vadd.f32 %v1680, %v1628
    %v1682 = vadd.f32 %v1681, %v1635
    %v1683 = vadd.f32 %v1682, %v1642
    %v1684 = vadd.f32 %v1683, %v1649
    %v1685 = vadd.f32 %v1684, %v1656
    %v1686 = vadd.f32 %v1685, %v1663
    %v1687 = vadd.f32 %v1686, %v1670
    %1688 = vadd.xlane.f32.xlu0 %v1687
    %v1689 = vpop.xlane.xlu0 %1688
    %v1690 = vrot.slane %v1689, 4
    %v1691 = vadd.f32 %v1689, %v1690
    %v1692 = vrot.slane %v1691, 2
    %v1693 = vadd.f32 %v1691, %v1692
    %v1694 = vrot.slane %v1693, 1
    %v1695 = vadd.f32 %v1693, %v1694
    %s1696 = vtos %v1695
    %s1697 = smul.f32 %s1671, %s1696
    %v1698 = vstv %s1697
    %v1699 = vadd.f32 %v1672, %v1698
    %1700 = vst [vmem:[#allocation7] sm:$0x1] %v1699
    %v1701 = vld [vmem:[#allocation8] sm:$0x1]
    %v1702 = vadd.f32 %v1543, %v1544
    %v1703 = vadd.f32 %v1702, %v1545
    %v1704 = vadd.f32 %v1703, %v1546
    %v1705 = vadd.f32 %v1704, %v1547
    %v1706 = vadd.f32 %v1705, %v1548
    %v1707 = vadd.f32 %v1706, %v1549
    %v1708 = vadd.f32 %v1707, %v1550
    %v1709 = vadd.f32 %v1708, %v1551
    %v1710 = vadd.f32 %v1709, %v1552
    %v1711 = vadd.f32 %v1710, %v1553
    %v1712 = vadd.f32 %v1711, %v1554
    %v1713 = vadd.f32 %v1712, %v1555
    %v1714 = vadd.f32 %v1713, %v1556
    %v1715 = vadd.f32 %v1714, %v1557
    %v1716 = vadd.f32 %v1715, %v1558
    %1717 = vadd.xlane.f32.xlu0 %v1716
    %v1718 = vpop.xlane.xlu0 %1717
    %v1719 = vrot.slane %v1718, 4
    %v1720 = vadd.f32 %v1718, %v1719
    %v1721 = vrot.slane %v1720, 2
    %v1722 = vadd.f32 %v1720, %v1721
    %v1723 = vrot.slane %v1722, 1
    %v1724 = vadd.f32 %v1722, %v1723
    %s1725 = vtos %v1724
    %s1726 = smul.f32 %s1671, %s1725
    %v1727 = vstv %s1726
    %v1728 = vadd.f32 %v1701, %v1727
    %1729 = vst [vmem:[#allocation8] sm:$0x1] %v1728
    // Predicated region
    $region34: #{tpu_custom_call.1} parent=1 // pred_check
      _
    $region35: #{tpu_custom_call.1} parent=1 // pred_check_branch
      %1731 = sbr.rel (0) target = $region37
    $region36: #{tpu_custom_call.1} parent=1 // pred_region
      %s1733 = ssub.s32 16, 16
      %1734 = vsyncadd [#allocation4], %s1733
      %s1736 = sshll.u32 [#allocation7], 4
      %s1737 = int_to_ptr.vmem [resolvable:$true] %s1736
      %1739 = dma.vmem_to_hbm [thread:$0]  %s1737, 16, %s5, [#allocation4]
    $region37: #{tpu_custom_call.1} parent=1 // pred_fallthru
      _
    // Predicated region
    $region38: #{tpu_custom_call.1} parent=1 // pred_check
      _
    $region39: #{tpu_custom_call.1} parent=1 // pred_check_branch
      %1741 = sbr.rel (0) target = $region41
    $region40: #{tpu_custom_call.1} parent=1 // pred_region
      %s1743 = ssub.s32 16, 16
      %1744 = vsyncadd [#allocation9], %s1743
      %s1746 = sshll.u32 [#allocation8], 4
      %s1747 = int_to_ptr.vmem [resolvable:$true] %s1746
      %1749 = dma.vmem_to_hbm [thread:$0]  %s1747, 16, %s6, [#allocation9]
    $region41: #{tpu_custom_call.1} parent=1 // pred_fallthru
      _
    // Predicated region
    $region42: #{tpu_custom_call.1} parent=1 // pred_check
      _
    $region43: #{tpu_custom_call.1} parent=1 // pred_check_branch
      %1751 = sbr.rel (0) target = $region45
    $region44: #{tpu_custom_call.1} parent=1 // pred_region
      %1752 = dma.done [#allocation4], 16
    $region45: #{tpu_custom_call.1} parent=1 // pred_fallthru
      _
    // Predicated region
    $region46: #{tpu_custom_call.1} parent=1 // pred_check
      _
    $region47: #{tpu_custom_call.1} parent=1 // pred_check_branch
      %1754 = sbr.rel (0) target = $region49
    $region48: #{tpu_custom_call.1} parent=1 // pred_region
      %1755 = dma.done [#allocation9], 16
    $region49: #{tpu_custom_call.1} parent=1 // pred_fallthru
      _
    %1756 = vsyncpa [#allocation3], 1
    %1757 = vsyncpa [#allocation6], 1
    %1758 = vsyncpa [#allocation4], 1
    %1759 = vsyncpa [#allocation9], 1

</llo_original>
